<compile_context>
chip_gen: v7x
topology: tpu7x:2x2x1
jax: 0.10.0
libtpu: 0.0.40
codegen_flags: <defaults>
</compile_context>

<pallas_src>
import functools

import numpy as np
import jax
import jax.numpy as jnp
from jax.experimental import pallas as pl
from jax.experimental.pallas import tpu as pltpu


# ---------------------------------------------------------------------------
# Fused Pallas kernel:
#   conv1 -> LeakyReLU -> conv2  (PatchGAN score_mat, lane-dense)
#   wmp conv -> sigmoid -> adaptive avg-pool (weight_mat)
#   mean(score_mat * weight_mat) -> scalar (SMEM)
# ---------------------------------------------------------------------------
def _fused_predictor_kernel(x1_ref, w1_ref, b1_ref, w2s_ref, b2_ref,
                            xw_ref, wwmp_ref, bwmp_ref, pool_ref, o_ref):
    # --- D layer 1: (C1, K1) @ (K1, N*Ho*Wo) bf16 GEMM, f32 accumulate -------
    h = jnp.dot(w1_ref[...], x1_ref[...], preferred_element_type=jnp.float32)
    h = h + b1_ref[...]                        # (C1, 1) broadcast along lanes
    h = jnp.where(h > 0, h, 0.2 * h)           # LeakyReLU(0.2), f32 on VPU

    # --- D layer 2: conv2 folded into h-column space -------------------------
    # w2s_ref[c] is (N*Ho*Wo, N*Hs*Ws): the 4x4/s2/p1 taps of conv2 for input
    # channel c, scattered over conv1-output columns (zero rows where conv2
    # hits its zero padding).  8 tiny lane-dense dots, accumulated in f32.
    c1, _, m2 = w2s_ref.shape
    acc = jnp.zeros((1, m2), jnp.float32)
    for c in range(c1):                        # statically unrolled
        acc = acc + jnp.dot(h[c:c + 1, :], w2s_ref[c],
                            preferred_element_type=jnp.float32)
    score = acc + b2_ref[0, 0]                 # (1, N*Hs*Ws)

    # --- wmp: saliency conv (3x3/s1/p1) + sigmoid, lane-dense (1, N*H*W) -----
    wm = jnp.dot(wwmp_ref[...], xw_ref[...], preferred_element_type=jnp.float32)
    wm = jax.nn.sigmoid(wm + bwmp_ref[0, 0])

    # --- converter: adaptive avg-pool folded into the reduction --------------
    # pool_ref is the constant (N*H*W, N*Hs*Ws) block-diagonal 1/16 matrix.
    weight_mat = jnp.dot(wm, pool_ref[...], preferred_element_type=jnp.float32)

    # --- mean(score_mat * weight_mat) -> scalar ------------------------------
    o_ref[0, 0] = jnp.sum(score * weight_mat) * (1.0 / m2)


# ---------------------------------------------------------------------------
# Wrapper-side (weights/geometry-only) preprocessing
# ---------------------------------------------------------------------------
def _im2col_T(x, kh, kw, stride, pad):
    """im2col in transposed, lane-dense (K, M) = (Cin*kh*kw, N*Ho*Wo) orientation."""
    N, C, H, W = x.shape
    xp = jnp.pad(x, ((0, 0), (0, 0), (pad, pad), (pad, pad)))
    Ho = (H + 2 * pad - kh) // stride + 1
    Wo = (W + 2 * pad - kw) // stride + 1
    cols = []
    for i in range(kh):
        for j in range(kw):
            cols.append(xp[:, :, i:i + stride * Ho:stride, j:j + stride * Wo:stride])
    p = jnp.stack(cols, axis=2)                               # (N, C, kh*kw, Ho, Wo)
    p = p.reshape(N, C * kh * kw, Ho * Wo)
    p = p.transpose(1, 0, 2).reshape(C * kh * kw, N * Ho * Wo)  # (K, N*Ho*Wo)
    return p, Ho, Wo


@functools.lru_cache(maxsize=None)
def _conv2_scatter_const(N, Hi, Wi, Hs, Ws, kh, kw, stride, pad):
    """0/1 tensor S[p, j, m]: conv tap p of output column m reads input column j."""
    S = np.zeros((kh * kw, N * Hi * Wi, N * Hs * Ws), np.float32)
    for n in range(N):
        for oh in range(Hs):
            for ow in range(Ws):
                m = n * Hs * Ws + oh * Ws + ow
                for ki in range(kh):
                    for kj in range(kw):
                        y = stride * oh + ki - pad
                        xx = stride * ow + kj - pad
                        if 0 <= y < Hi and 0 <= xx < Wi:
                            S[ki * kw + kj, n * Hi * Wi + y * Wi + xx, m] = 1.0
    return S


@functools.lru_cache(maxsize=None)
def _pool_matrix_const(N, H, W, Hs, Ws):
    """Adaptive avg-pool (H,W)->(Hs,Ws), batch-block-diagonal, as (N*H*W, N*Hs*Ws)."""
    # Matches torch.nn.AdaptiveAvgPool2d exactly only for divisible sizes.
    assert H % Hs == 0 and W % Ws == 0, "adaptive pool requires divisible sizes here"
    bh, bw = H // Hs, W // Ws
    P = np.zeros((N * H * W, N * Hs * Ws), np.float32)
    for n in range(N):
        for y in range(H):
            for x in range(W):
                P[n * H * W + y * W + x,
                  n * Hs * Ws + (y // bh) * Ws + (x // bw)] = 1.0 / (bh * bw)
    return P


# ---------------------------------------------------------------------------
# Model
# ---------------------------------------------------------------------------
def init_params(key):
    ks = jax.random.split(key, 6)
    return {
        # D: PatchGAN head: conv4x4 s2 (4->8) + LeakyReLU(0.2), conv4x4 s2 (8->1)
        "d_conv1_w": jax.random.normal(ks[0], (8, 4, 4, 4), jnp.float32) * 0.05,
        "d_conv1_b": jax.random.normal(ks[1], (8,), jnp.float32) * 0.05,
        "d_conv2_w": jax.random.normal(ks[2], (1, 8, 4, 4), jnp.float32) * 0.05,
        "d_conv2_b": jax.random.normal(ks[3], (1,), jnp.float32) * 0.05,
        # wmp: weight-matrix producer: conv3x3 s1 (4->1) + sigmoid (+ adaptive pool)
        "wmp_conv_w": jax.random.normal(ks[4], (1, 4, 3, 3), jnp.float32) * 0.05,
        "wmp_conv_b": jax.random.normal(ks[5], (1,), jnp.float32) * 0.05,
    }


@jax.jit
def given_mat_weighted_average_predictor(params, x):
    N, C, H, W = x.shape
    co1, ci1, kh1, kw1 = params["d_conv1_w"].shape
    _, c1, kh2, kw2 = params["d_conv2_w"].shape

    # ---- D layer 1 patches (K = Cin*4*4 = 64, M = N*Ho*Wo = 128), lane-dense
    x1, Ho, Wo = _im2col_T(x, kh1, kw1, 2, 1)
    w1 = params["d_conv1_w"].reshape(co1, -1)                 # (8, 64)
    b1 = params["d_conv1_b"].reshape(-1, 1)                   # (8, 1)

    # ---- D layer 2: scatter its weights into conv1-output column space -----
    Hs = (Ho + 2 * 1 - kh2) // 2 + 1
    Ws = (Wo + 2 * 1 - kw2) // 2 + 1
    s2 = jnp.asarray(_conv2_scatter_const(N, Ho, Wo, Hs, Ws, kh2, kw2, 2, 1))
    w2r = params["d_conv2_w"][0].reshape(c1, kh2 * kw2).T     # (16, C1)
    w2s = jnp.einsum('pc,pjm->cjm', w2r, s2)                  # (C1, N*Ho*Wo, N*Hs*Ws)
    b2 = params["d_conv2_b"].reshape(1, 1)

    # ---- wmp patches (K = Cin*3*3 = 36 -> padded to packing multiple) ------
    xw, Hw, Ww = _im2col_T(x, 3, 3, 1, 1)
    kpad = (-xw.shape[0]) % 16
    xw = jnp.pad(xw, ((0, kpad), (0, 0)))
    wwmp = jnp.pad(params["wmp_conv_w"].reshape(1, -1), ((0, 0), (0, kpad)))
    bwmp = params["wmp_conv_b"].reshape(1, 1)

    # ---- adaptive avg-pool (H,W)->(Hs,Ws) as a constant matrix -------------
    pool = jnp.asarray(_pool_matrix_const(N, Hw, Ww, Hs, Ws))

    # Mirror of the PyTorch shape assert: weight_mat and score_mat agree.
    assert pool.shape[1] == w2s.shape[2] == N * Hs * Ws

    # ---- single fused pallas_call ------------------------------------------
    vmem = pl.BlockSpec(memory_space=pltpu.MemorySpace.VMEM)
    smem = pl.BlockSpec(memory_space=pltpu.MemorySpace.SMEM)
    out = pl.pallas_call(
        _fused_predictor_kernel,
        out_shape=jax.ShapeDtypeStruct((1, 1), jnp.float32),
        in_specs=[vmem,   # x1  (K1, N*Ho*Wo)        bf16
                  vmem,   # w1  (C1, K1)             bf16
                  vmem,   # b1  (C1, 1)              f32
                  vmem,   # w2s (C1, N*Ho*Wo, M2)    f32
                  smem,   # b2  (1, 1)               f32 scalar
                  vmem,   # xw  (Kw, N*H*W)          bf16
                  vmem,   # wwmp (1, Kw)             bf16
                  smem,   # bwmp (1, 1)              f32 scalar
                  vmem],  # pool (N*H*W, M2)         f32
        out_specs=smem,
        compiler_params=pltpu.CompilerParams(vmem_limit_bytes=32 * 1024 * 1024),
    )(
        x1.astype(jnp.bfloat16), w1.astype(jnp.bfloat16), b1,
        w2s, b2,
        xw.astype(jnp.bfloat16), wwmp.astype(jnp.bfloat16), bwmp,
        pool,
    )
    return out[0, 0]


# ---------------------------------------------------------------------------
# Pure-JAX reference of the same forward pass (for a correctness check)
# ---------------------------------------------------------------------------
def _reference(params, x):
    dn = ("NCHW", "OIHW", "NCHW")
    h = jax.lax.conv_general_dilated(x, params["d_conv1_w"], (2, 2),
                                     ((1, 1), (1, 1)), dimension_numbers=dn)
    h = h + params["d_conv1_b"][None, :, None, None]
    h = jnp.where(h > 0, h, 0.2 * h)
    score = jax.lax.conv_general_dilated(h, params["d_conv2_w"], (2, 2),
                                         ((1, 1), (1, 1)), dimension_numbers=dn)
    score = score + params["d_conv2_b"][None, :, None, None]
    wmap = jax.lax.conv_general_dilated(x, params["wmp_conv_w"], (1, 1),
                                        ((1, 1), (1, 1)), dimension_numbers=dn)
    wmap = jax.nn.sigmoid(wmap + params["wmp_conv_b"][None, :, None, None])
    Nb, _, Hs, Ws = score.shape
    _, _, H, W = wmap.shape
    wmat = wmap.reshape(Nb, 1, Hs, H // Hs, Ws, W // Ws).mean(axis=(3, 5))
    assert wmat.shape == score.shape
    return jnp.mean(score * wmat)


if __name__ == "__main__":
    key = jax.random.PRNGKey(0)
    k_params, k_x = jax.random.split(key)
    params = init_params(k_params)
    x = jax.random.normal(k_x, (2, 4, 16, 16), jnp.float32)   # NCHW

    out = given_mat_weighted_average_predictor(params, x)
    out = jax.block_until_ready(out)
    assert out.shape == () and bool(jnp.isfinite(out))

    # Reference check: round the same operands to bf16 that the kernel feeds to
    # the MXU (bf16 x bf16 products are exact in f32), so the check isolates
    # wiring/layout errors rather than operand-rounding noise.
    params_r = dict(params)
    params_r["d_conv1_w"] = params["d_conv1_w"].astype(jnp.bfloat16).astype(jnp.float32)
    params_r["wmp_conv_w"] = params["wmp_conv_w"].astype(jnp.bfloat16).astype(jnp.float32)
    x_r = x.astype(jnp.bfloat16).astype(jnp.float32)
    ref = _reference(params_r, x_r)
    assert jnp.allclose(out, ref, rtol=1e-2, atol=1e-4), (float(out), float(ref))

    print("KERNEL_OK")
</pallas_src>

<mosaic_0001>
module attributes {stable_mosaic.version = 11 : i64} {
  func.func @_fused_predictor_kernel(%arg0: memref<64x128xbf16, #tpu.memory_space<vmem>>, %arg1: memref<8x64xbf16, #tpu.memory_space<vmem>>, %arg2: memref<8x1xf32, #tpu.memory_space<vmem>>, %arg3: memref<8x128x32xf32, #tpu.memory_space<vmem>>, %arg4: memref<1x1xf32, #tpu.memory_space<smem>>, %arg5: memref<48x512xbf16, #tpu.memory_space<vmem>>, %arg6: memref<1x48xbf16, #tpu.memory_space<vmem>>, %arg7: memref<1x1xf32, #tpu.memory_space<smem>>, %arg8: memref<512x32xf32, #tpu.memory_space<vmem>>, %arg9: memref<1x1xf32, #tpu.memory_space<smem>>) attributes {dimension_semantics = [], scalar_prefetch = 0 : i64, scratch_operands = 0 : i64, tpu.core_type = #tpu.core_type<tc>} {
    %c0 = arith.constant 0 : index
    %c0_0 = arith.constant 0 : index
    %0 = vector.load %arg1[%c0, %c0_0] : memref<8x64xbf16, #tpu.memory_space<vmem>>, vector<8x64xbf16>
    %c0_1 = arith.constant 0 : index
    %c0_2 = arith.constant 0 : index
    %1 = vector.load %arg0[%c0_1, %c0_2] : memref<64x128xbf16, #tpu.memory_space<vmem>>, vector<64x128xbf16>
    %cst = arith.constant dense<0.000000e+00> : vector<8x128xf32>
    %2 = tpu.matmul %0, %1, %cst {dimension_numbers = #tpu.dot_dimension_numbers<[1], [0], [0], [1], [0, 0, 1, 1], [], []>} : vector<8x64xbf16>, vector<64x128xbf16>, vector<8x128xf32> -> vector<8x128xf32>
    %c0_3 = arith.constant 0 : index
    %c0_4 = arith.constant 0 : index
    %3 = vector.load %arg2[%c0_3, %c0_4] : memref<8x1xf32, #tpu.memory_space<vmem>>, vector<8x1xf32>
    %4 = vector.broadcast %3 : vector<8x1xf32> to vector<8x128xf32>
    %5 = arith.addf %2, %4 : vector<8x128xf32>
    %cst_5 = arith.constant 0.000000e+00 : f32
    %6 = vector.broadcast %cst_5 : f32 to vector<8x128xf32>
    %7 = arith.cmpf ogt, %5, %6 : vector<8x128xf32>
    %cst_6 = arith.constant 2.000000e-01 : f32
    %8 = vector.broadcast %cst_6 : f32 to vector<8x128xf32>
    %9 = arith.mulf %8, %5 : vector<8x128xf32>
    %10 = arith.select %7, %5, %9 : vector<8x128xi1>, vector<8x128xf32>
    %cst_7 = arith.constant 0.000000e+00 : f32
    %11 = vector.broadcast %cst_7 : f32 to vector<1x32xf32>
    %12 = vector.extract_strided_slice %10 {offsets = [0, 0], sizes = [1, 128], strides = [1, 1]} : vector<8x128xf32> to vector<1x128xf32>
    %c0_8 = arith.constant 0 : index
    %c0_9 = arith.constant 0 : index
    %c0_10 = arith.constant 0 : index
    %13 = vector.load %arg3[%c0_8, %c0_9, %c0_10] : memref<8x128x32xf32, #tpu.memory_space<vmem>>, vector<1x128x32xf32>
    %14 = vector.shape_cast %13 : vector<1x128x32xf32> to vector<128x32xf32>
    %cst_11 = arith.constant dense<0.000000e+00> : vector<1x32xf32>
    %15 = tpu.matmul %12, %14, %cst_11 {dimension_numbers = #tpu.dot_dimension_numbers<[1], [0], [0], [1], [0, 0, 1, 1], [], []>} : vector<1x128xf32>, vector<128x32xf32>, vector<1x32xf32> -> vector<1x32xf32>
    %16 = arith.addf %11, %15 : vector<1x32xf32>
    %17 = vector.extract_strided_slice %10 {offsets = [1, 0], sizes = [1, 128], strides = [1, 1]} : vector<8x128xf32> to vector<1x128xf32>
    %c1 = arith.constant 1 : index
    %c0_12 = arith.constant 0 : index
    %c0_13 = arith.constant 0 : index
    %18 = vector.load %arg3[%c1, %c0_12, %c0_13] : memref<8x128x32xf32, #tpu.memory_space<vmem>>, vector<1x128x32xf32>
    %19 = vector.shape_cast %18 : vector<1x128x32xf32> to vector<128x32xf32>
    %cst_14 = arith.constant dense<0.000000e+00> : vector<1x32xf32>
    %20 = tpu.matmul %17, %19, %cst_14 {dimension_numbers = #tpu.dot_dimension_numbers<[1], [0], [0], [1], [0, 0, 1, 1], [], []>} : vector<1x128xf32>, vector<128x32xf32>, vector<1x32xf32> -> vector<1x32xf32>
    %21 = arith.addf %16, %20 : vector<1x32xf32>
    %22 = vector.extract_strided_slice %10 {offsets = [2, 0], sizes = [1, 128], strides = [1, 1]} : vector<8x128xf32> to vector<1x128xf32>
    %c2 = arith.constant 2 : index
    %c0_15 = arith.constant 0 : index
    %c0_16 = arith.constant 0 : index
    %23 = vector.load %arg3[%c2, %c0_15, %c0_16] : memref<8x128x32xf32, #tpu.memory_space<vmem>>, vector<1x128x32xf32>
    %24 = vector.shape_cast %23 : vector<1x128x32xf32> to vector<128x32xf32>
    %cst_17 = arith.constant dense<0.000000e+00> : vector<1x32xf32>
    %25 = tpu.matmul %22, %24, %cst_17 {dimension_numbers = #tpu.dot_dimension_numbers<[1], [0], [0], [1], [0, 0, 1, 1], [], []>} : vector<1x128xf32>, vector<128x32xf32>, vector<1x32xf32> -> vector<1x32xf32>
    %26 = arith.addf %21, %25 : vector<1x32xf32>
    %27 = vector.extract_strided_slice %10 {offsets = [3, 0], sizes = [1, 128], strides = [1, 1]} : vector<8x128xf32> to vector<1x128xf32>
    %c3 = arith.constant 3 : index
    %c0_18 = arith.constant 0 : index
    %c0_19 = arith.constant 0 : index
    %28 = vector.load %arg3[%c3, %c0_18, %c0_19] : memref<8x128x32xf32, #tpu.memory_space<vmem>>, vector<1x128x32xf32>
    %29 = vector.shape_cast %28 : vector<1x128x32xf32> to vector<128x32xf32>
    %cst_20 = arith.constant dense<0.000000e+00> : vector<1x32xf32>
    %30 = tpu.matmul %27, %29, %cst_20 {dimension_numbers = #tpu.dot_dimension_numbers<[1], [0], [0], [1], [0, 0, 1, 1], [], []>} : vector<1x128xf32>, vector<128x32xf32>, vector<1x32xf32> -> vector<1x32xf32>
    %31 = arith.addf %26, %30 : vector<1x32xf32>
    %32 = vector.extract_strided_slice %10 {offsets = [4, 0], sizes = [1, 128], strides = [1, 1]} : vector<8x128xf32> to vector<1x128xf32>
    %c4 = arith.constant 4 : index
    %c0_21 = arith.constant 0 : index
    %c0_22 = arith.constant 0 : index
    %33 = vector.load %arg3[%c4, %c0_21, %c0_22] : memref<8x128x32xf32, #tpu.memory_space<vmem>>, vector<1x128x32xf32>
    %34 = vector.shape_cast %33 : vector<1x128x32xf32> to vector<128x32xf32>
    %cst_23 = arith.constant dense<0.000000e+00> : vector<1x32xf32>
    %35 = tpu.matmul %32, %34, %cst_23 {dimension_numbers = #tpu.dot_dimension_numbers<[1], [0], [0], [1], [0, 0, 1, 1], [], []>} : vector<1x128xf32>, vector<128x32xf32>, vector<1x32xf32> -> vector<1x32xf32>
    %36 = arith.addf %31, %35 : vector<1x32xf32>
    %37 = vector.extract_strided_slice %10 {offsets = [5, 0], sizes = [1, 128], strides = [1, 1]} : vector<8x128xf32> to vector<1x128xf32>
    %c5 = arith.constant 5 : index
    %c0_24 = arith.constant 0 : index
    %c0_25 = arith.constant 0 : index
    %38 = vector.load %arg3[%c5, %c0_24, %c0_25] : memref<8x128x32xf32, #tpu.memory_space<vmem>>, vector<1x128x32xf32>
    %39 = vector.shape_cast %38 : vector<1x128x32xf32> to vector<128x32xf32>
    %cst_26 = arith.constant dense<0.000000e+00> : vector<1x32xf32>
    %40 = tpu.matmul %37, %39, %cst_26 {dimension_numbers = #tpu.dot_dimension_numbers<[1], [0], [0], [1], [0, 0, 1, 1], [], []>} : vector<1x128xf32>, vector<128x32xf32>, vector<1x32xf32> -> vector<1x32xf32>
    %41 = arith.addf %36, %40 : vector<1x32xf32>
    %42 = vector.extract_strided_slice %10 {offsets = [6, 0], sizes = [1, 128], strides = [1, 1]} : vector<8x128xf32> to vector<1x128xf32>
    %c6 = arith.constant 6 : index
    %c0_27 = arith.constant 0 : index
    %c0_28 = arith.constant 0 : index
    %43 = vector.load %arg3[%c6, %c0_27, %c0_28] : memref<8x128x32xf32, #tpu.memory_space<vmem>>, vector<1x128x32xf32>
    %44 = vector.shape_cast %43 : vector<1x128x32xf32> to vector<128x32xf32>
    %cst_29 = arith.constant dense<0.000000e+00> : vector<1x32xf32>
    %45 = tpu.matmul %42, %44, %cst_29 {dimension_numbers = #tpu.dot_dimension_numbers<[1], [0], [0], [1], [0, 0, 1, 1], [], []>} : vector<1x128xf32>, vector<128x32xf32>, vector<1x32xf32> -> vector<1x32xf32>
    %46 = arith.addf %41, %45 : vector<1x32xf32>
    %47 = vector.extract_strided_slice %10 {offsets = [7, 0], sizes = [1, 128], strides = [1, 1]} : vector<8x128xf32> to vector<1x128xf32>
    %c7 = arith.constant 7 : index
    %c0_30 = arith.constant 0 : index
    %c0_31 = arith.constant 0 : index
    %48 = vector.load %arg3[%c7, %c0_30, %c0_31] : memref<8x128x32xf32, #tpu.memory_space<vmem>>, vector<1x128x32xf32>
    %49 = vector.shape_cast %48 : vector<1x128x32xf32> to vector<128x32xf32>
    %cst_32 = arith.constant dense<0.000000e+00> : vector<1x32xf32>
    %50 = tpu.matmul %47, %49, %cst_32 {dimension_numbers = #tpu.dot_dimension_numbers<[1], [0], [0], [1], [0, 0, 1, 1], [], []>} : vector<1x128xf32>, vector<128x32xf32>, vector<1x32xf32> -> vector<1x32xf32>
    %51 = arith.addf %46, %50 : vector<1x32xf32>
    %c0_33 = arith.constant 0 : index
    %c0_34 = arith.constant 0 : index
    %52 = memref.load %arg4[%c0_33, %c0_34] : memref<1x1xf32, #tpu.memory_space<smem>>
    %53 = vector.broadcast %52 : f32 to vector<1x32xf32>
    %54 = arith.addf %51, %53 : vector<1x32xf32>
    %c0_35 = arith.constant 0 : index
    %c0_36 = arith.constant 0 : index
    %55 = vector.load %arg6[%c0_35, %c0_36] : memref<1x48xbf16, #tpu.memory_space<vmem>>, vector<1x48xbf16>
    %c0_37 = arith.constant 0 : index
    %c0_38 = arith.constant 0 : index
    %56 = vector.load %arg5[%c0_37, %c0_38] : memref<48x512xbf16, #tpu.memory_space<vmem>>, vector<48x512xbf16>
    %cst_39 = arith.constant dense<0.000000e+00> : vector<1x512xf32>
    %57 = tpu.matmul %55, %56, %cst_39 {dimension_numbers = #tpu.dot_dimension_numbers<[1], [0], [0], [1], [0, 0, 1, 1], [], []>} : vector<1x48xbf16>, vector<48x512xbf16>, vector<1x512xf32> -> vector<1x512xf32>
    %c0_40 = arith.constant 0 : index
    %c0_41 = arith.constant 0 : index
    %58 = memref.load %arg7[%c0_40, %c0_41] : memref<1x1xf32, #tpu.memory_space<smem>>
    %59 = vector.broadcast %58 : f32 to vector<1x512xf32>
    %60 = arith.addf %57, %59 : vector<1x512xf32>
    %61 = arith.negf %60 : vector<1x512xf32>
    %62 = math.exp %61 : vector<1x512xf32>
    %cst_42 = arith.constant 1.000000e+00 : f32
    %63 = vector.broadcast %cst_42 : f32 to vector<1x512xf32>
    %64 = arith.addf %63, %62 : vector<1x512xf32>
    %65 = arith.divf %63, %64 : vector<1x512xf32>
    %c0_43 = arith.constant 0 : index
    %c0_44 = arith.constant 0 : index
    %66 = vector.load %arg8[%c0_43, %c0_44] : memref<512x32xf32, #tpu.memory_space<vmem>>, vector<512x32xf32>
    %cst_45 = arith.constant dense<0.000000e+00> : vector<1x32xf32>
    %67 = tpu.matmul %65, %66, %cst_45 {dimension_numbers = #tpu.dot_dimension_numbers<[1], [0], [0], [1], [0, 0, 1, 1], [], []>} : vector<1x512xf32>, vector<512x32xf32>, vector<1x32xf32> -> vector<1x32xf32>
    %68 = arith.mulf %54, %67 : vector<1x32xf32>
    %69 = vector.shape_cast %68 : vector<1x32xf32> to vector<1x1x32xf32>
    %cst_46 = arith.constant dense<0.000000e+00> : vector<1xf32>
    %70 = vector.multi_reduction <add>, %69, %cst_46 [1, 2] : vector<1x1x32xf32> to vector<1xf32>
    %71 = vector.shape_cast %70 : vector<1xf32> to vector<1x1x1xf32>
    %72 = vector.extract %71[0, 0, 0] : f32 from vector<1x1x1xf32>
    %cst_47 = arith.constant 3.125000e-02 : f32
    %73 = arith.mulf %72, %cst_47 : f32
    %c0_48 = arith.constant 0 : index
    %c0_49 = arith.constant 0 : index
    %74 = memref.load %arg9[%c0_48, %c0_49] : memref<1x1xf32, #tpu.memory_space<smem>>
    memref.store %73, %arg9[%c0_48, %c0_49] : memref<1x1xf32, #tpu.memory_space<smem>>
    return
  }
}

</mosaic_0001>

<llo_original>
// kernel: given_mat_weighted_average_predictor.1
$region0: #{given_mat_weighted_average_predictor.1}
  #allocation0 [shape = 'u32[]', space=smem, size = 0x4, offset = 0x4, fixed_abs, tag = 'smem constant byte address 0x4 - core index']
  #allocation1 [shape = 'u32[144,128]{1,0:T(1,128)}', space=vmem, size = 0x12000, scoped, tag = 'internal scratch']
  #allocation2 [shape = 'f32[1,1]{1,0:T(1,128)S(6)}', space=smem, size = 0x200, scoped, tag = 'scoped memory for given_mat_weighted_average_predictor.1']
  #allocation3 [shape = 'f32[1,1]{1,0:T(1,128)S(6)}', space=smem, size = 0x200, scoped, tag = 'scoped memory for given_mat_weighted_average_predictor.1']
  %s0 = inlined_call_operand.vmem [shape: bf16[64,128], index: 0, kind: input, shape index: {}]
  %s1 = inlined_call_operand.vmem [shape: bf16[8,64], index: 1, kind: input, shape index: {}]
  %s2 = inlined_call_operand.vmem [shape: f32[8,1], index: 2, kind: input, shape index: {}]
  %s3 = inlined_call_operand.vmem [shape: f32[8,128,32], index: 3, kind: input, shape index: {}]
  %s4 = inlined_call_operand.<no memory space> [shape: f32[1,1], index: 4, kind: input, shape index: {}]
  %s5 = inlined_call_operand.vmem [shape: bf16[48,512], index: 5, kind: input, shape index: {}]
  %s6 = inlined_call_operand.vmem [shape: bf16[1,48], index: 6, kind: input, shape index: {}]
  %s7 = inlined_call_operand.<no memory space> [shape: f32[1,1], index: 7, kind: input, shape index: {}]
  %s8 = inlined_call_operand.vmem [shape: f32[512,32], index: 8, kind: input, shape index: {}]
  %s9 = inlined_call_operand.hbm [shape: f32[1,1], index: 9, kind: output, shape index: {}]
  %s10 = sld [smem:[#allocation0]]
  $region46: #{given_mat_weighted_average_predictor.1} parent=0
    _
  %s12 = ssub.s32 1, %s10
  %s13 = scalar_select 0, %s12, %s10
  %14 = sst [smem:[#allocation2]] %s4
  %15 = sst [smem:[#allocation3]] %s7
  $region1: #{given_mat_weighted_average_predictor.1} parent=0
    #allocation4 [shape = 'u8[512]{0}', space=smem, size = 0x200, scoped, tag = 'output window, operand 0, single buffered']
    #allocation5 [shape = 's32[1]{0}', space=sflag, size = 0x4, scoped, tag = 'scoped memory for given_mat_weighted_average_predictor.1']
    %16 = vsyncpa [#allocation5], 0
    // Predicated region
    $region2: #{given_mat_weighted_average_predictor.1} parent=1 // pred_check
      _
    $region3: #{given_mat_weighted_average_predictor.1} parent=1 // pred_check_branch
      %18 = sbr.rel (0) target = $region5
    $region4: #{given_mat_weighted_average_predictor.1} parent=1 // pred_region
      _
    $region5: #{given_mat_weighted_average_predictor.1} parent=1 // pred_fallthru
      _
    // Predicated region
    $region6: #{given_mat_weighted_average_predictor.1} parent=1 // pred_check
      _
    $region7: #{given_mat_weighted_average_predictor.1} parent=1 // pred_check_branch
      %20 = sbr.rel (0) target = $region9
    $region8: #{given_mat_weighted_average_predictor.1} parent=1 // pred_region
      _
    $region9: #{given_mat_weighted_average_predictor.1} parent=1 // pred_fallthru
      _
    // Predicated region
    $region10: #{given_mat_weighted_average_predictor.1} parent=1 // pred_check
      _
    $region11: #{given_mat_weighted_average_predictor.1} parent=1 // pred_check_branch
      %22 = sbr.rel (0) target = $region13
    $region12: #{given_mat_weighted_average_predictor.1} parent=1 // pred_region
      _
    $region13: #{given_mat_weighted_average_predictor.1} parent=1 // pred_fallthru
      _
    // Predicated region
    $region14: #{given_mat_weighted_average_predictor.1} parent=1 // pred_check
      _
    $region15: #{given_mat_weighted_average_predictor.1} parent=1 // pred_check_branch
      %24 = sbr.rel (0) target = $region17
    $region16: #{given_mat_weighted_average_predictor.1} parent=1 // pred_region
      _
    $region17: #{given_mat_weighted_average_predictor.1} parent=1 // pred_fallthru
      _
    // Predicated region
    $region18: #{given_mat_weighted_average_predictor.1} parent=1 // pred_check
      _
    $region19: #{given_mat_weighted_average_predictor.1} parent=1 // pred_check_branch
      %26 = sbr.rel (0) target = $region21
    $region20: #{given_mat_weighted_average_predictor.1} parent=1 // pred_region
      _
    $region21: #{given_mat_weighted_average_predictor.1} parent=1 // pred_fallthru
      _
    // Predicated region
    $region22: #{given_mat_weighted_average_predictor.1} parent=1 // pred_check
      _
    $region23: #{given_mat_weighted_average_predictor.1} parent=1 // pred_check_branch
      %28 = sbr.rel (0) target = $region25
    $region24: #{given_mat_weighted_average_predictor.1} parent=1 // pred_region
      _
    $region25: #{given_mat_weighted_average_predictor.1} parent=1 // pred_fallthru
      _
    // Predicated region
    $region26: #{given_mat_weighted_average_predictor.1} parent=1 // pred_check
      _
    $region27: #{given_mat_weighted_average_predictor.1} parent=1 // pred_check_branch
      %30 = sbr.rel (0) target = $region29
    $region28: #{given_mat_weighted_average_predictor.1} parent=1 // pred_region
      _
    $region29: #{given_mat_weighted_average_predictor.1} parent=1 // pred_fallthru
      _
    // Predicated region
    $region30: #{given_mat_weighted_average_predictor.1} parent=1 // pred_check
      _
    $region31: #{given_mat_weighted_average_predictor.1} parent=1 // pred_check_branch
      %32 = sbr.rel (0) target = $region33
    $region32: #{given_mat_weighted_average_predictor.1} parent=1 // pred_region
      _
    $region33: #{given_mat_weighted_average_predictor.1} parent=1 // pred_fallthru
      _
    // Predicated region
    $region34: #{given_mat_weighted_average_predictor.1} parent=1 // pred_check
      _
    $region35: #{given_mat_weighted_average_predictor.1} parent=1 // pred_check_branch
      %34 = sbr.rel (0) target = $region37
    $region36: #{given_mat_weighted_average_predictor.1} parent=1 // pred_region
      _
    $region37: #{given_mat_weighted_average_predictor.1} parent=1 // pred_fallthru
      _
    %v36 = vld [vmem:[%s1] sm:$0xf]
    %v37 = vld [vmem:[%s0] sm:$0xf]
    %v38 = vld [vmem:[%s0 + $0x4] sm:$0xf]
    %v39 = vld [vmem:[%s0 + $0x8] sm:$0xf]
    %v40 = vld [vmem:[%s0 + $0xc] sm:$0xf]
    %v41 = vld [vmem:[%s0 + $0x10] sm:$0xf]
    %v42 = vld [vmem:[%s0 + $0x14] sm:$0xf]
    %v43 = vld [vmem:[%s0 + $0x18] sm:$0xf]
    %v44 = vld [vmem:[%s0 + $0x1c] sm:$0xf]
    %v45 = vld [vmem:[%s2] sm:$0xff]
    %47 = vset.pattern.permute.xlu0 0
    %48 = vperm.xlu0 %47, %v45
    %v49 = vpop.permute.xlu0 %48
    %v59 = vunpack.c.l.b16 %v37
    %v60 = vunpack.c.l.b16 %v38
    %v61 = vunpack.c.l.b16 %v39
    %v62 = vunpack.c.l.b16 %v40
    %v63 = vunpack.c.l.b16 %v41
    %v64 = vunpack.c.l.b16 %v42
    %v65 = vunpack.c.l.b16 %v43
    %v66 = vunpack.c.l.b16 %v44
    %v67 = vpack.c.b16 %v60, %v59
    %v68 = vpack.c.b16 %v62, %v61
    %v69 = vpack.c.b16 %v64, %v63
    %v70 = vpack.c.b16 %v66, %v65
    %vm75 = vcmask 523264
    %v77 = vsel %vm75, %v36, 0
    %79 = vmatprep.subr.bf16.mxu0 0
    %80 = vmatpush1.bf16.msra.mxu0 %v67
    %81 = vmatprep.subr.bf16.mxu0 0
    %82 = vmatpush1.bf16.msra.mxu0 %v68
    %83 = vmatprep.subr.bf16.mxu0 0
    %84 = vmatpush1.bf16.msra.mxu0 %v69
    %85 = vmatprep.subr.bf16.mxu0 0
    %86 = vmatpush1.bf16.msra.mxu0 %v70
    %87 = vmatprep.subr.bf16.mxu0 0
    %88 = vmatpush1.bf16.msra.mxu0 0
    %89 = vmatprep.subr.bf16.mxu0 0
    %90 = vmatpush1.bf16.msra.mxu0 0
    %91 = vmatprep.subr.bf16.mxu0 0
    %92 = vmatpush1.bf16.msra.mxu0 0
    %93 = vmatprep.subr.bf16.mxu0 0
    %94 = vmatpush1.bf16.msra.mxu0 0
    %95 = vmatprep.subr.bf16.mxu0 0
    %96 = vmatpush1.bf16.msra.mxu0 0
    %97 = vmatprep.subr.bf16.mxu0 0
    %98 = vmatpush1.bf16.msra.mxu0 0
    %99 = vmatprep.subr.bf16.mxu0 0
    %100 = vmatpush1.bf16.msra.mxu0 0
    %101 = vmatprep.subr.bf16.mxu0 0
    %102 = vmatpush1.bf16.msra.mxu0 0
    %103 = vmatprep.subr.bf16.mxu0 0
    %104 = vmatpush1.bf16.msra.mxu0 0
    %105 = vmatprep.subr.bf16.mxu0 0
    %106 = vmatpush1.bf16.msra.mxu0 0
    %107 = vmatprep.subr.bf16.mxu0 0
    %108 = vmatpush1.bf16.msra.mxu0 0
    %109 = vmatprep.subr.bf16.mxu0 0
    %110 = vmatpush1.bf16.msra.mxu0 0
    %111 = vmatprep.mubr.bf16.mxu0 0
    %112 = vmatmul.mubr.bf16.gmra.mrb[0].mxu0 %v77
    %v113 = vpop.f32.mrb[0].mxu0
    %v114 = vadd.f32 %v49, %v113
    %v115 = vpop.f32.mrb[0].mxu0
    %v116 = vpop.f32.mrb[0].mxu0
    %v117 = vpop.f32.mrb[0].mxu0
    %118 = vdwg.mxu0
    %vm119 = vcmp.gt.f32.partialorder %v114, 0.0
    %v120 = vmul.f32 %v114, 0.2
    %v121 = vsel %vm119, %v114, %v120
    %v122 = vld [vmem:[%s3] sm:$0xff]
    %v123 = vld [vmem:[%s3 + $0x8] sm:$0xff]
    %v124 = vld [vmem:[%s3 + $0x10] sm:$0xff]
    %v125 = vld [vmem:[%s3 + $0x18] sm:$0xff]
    %v126 = vld [vmem:[%s3 + $0x20] sm:$0xff]
    %v127 = vld [vmem:[%s3 + $0x28] sm:$0xff]
    %v128 = vld [vmem:[%s3 + $0x30] sm:$0xff]
    %v129 = vld [vmem:[%s3 + $0x38] sm:$0xff]
    %v130 = vld [vmem:[%s3 + $0x40] sm:$0xff]
    %v131 = vld [vmem:[%s3 + $0x48] sm:$0xff]
    %v132 = vld [vmem:[%s3 + $0x50] sm:$0xff]
    %v133 = vld [vmem:[%s3 + $0x58] sm:$0xff]
    %v134 = vld [vmem:[%s3 + $0x60] sm:$0xff]
    %v135 = vld [vmem:[%s3 + $0x68] sm:$0xff]
    %v136 = vld [vmem:[%s3 + $0x70] sm:$0xff]
    %v137 = vld [vmem:[%s3 + $0x78] sm:$0xff]
    %s138 = scalar_lea.vmem %s3, 128
    %v139 = vld [vmem:[%s138] sm:$0xff]
    %v140 = vld [vmem:[%s138 + $0x8] sm:$0xff]
    %v141 = vld [vmem:[%s138 + $0x10] sm:$0xff]
    %v142 = vld [vmem:[%s138 + $0x18] sm:$0xff]
    %v143 = vld [vmem:[%s138 + $0x20] sm:$0xff]
    %v144 = vld [vmem:[%s138 + $0x28] sm:$0xff]
    %v145 = vld [vmem:[%s138 + $0x30] sm:$0xff]
    %v146 = vld [vmem:[%s138 + $0x38] sm:$0xff]
    %v147 = vld [vmem:[%s138 + $0x40] sm:$0xff]
    %v148 = vld [vmem:[%s138 + $0x48] sm:$0xff]
    %v149 = vld [vmem:[%s138 + $0x50] sm:$0xff]
    %v150 = vld [vmem:[%s138 + $0x58] sm:$0xff]
    %v151 = vld [vmem:[%s138 + $0x60] sm:$0xff]
    %v152 = vld [vmem:[%s138 + $0x68] sm:$0xff]
    %v153 = vld [vmem:[%s138 + $0x70] sm:$0xff]
    %v154 = vld [vmem:[%s138 + $0x78] sm:$0xff]
    %v156 = vrot.slane %v121, 1
    %158 = vmatprep.subr.mxu0 0.0
    %159 = vmatpush1.msra.mxu0 %v139
    %160 = vmatprep.subr.mxu0 0.0
    %161 = vmatpush1.msra.mxu0 %v140
    %162 = vmatprep.subr.mxu0 0.0
    %163 = vmatpush1.msra.mxu0 %v141
    %164 = vmatprep.subr.mxu0 0.0
    %165 = vmatpush1.msra.mxu0 %v142
    %166 = vmatprep.subr.mxu0 0.0
    %167 = vmatpush1.msra.mxu0 %v143
    %168 = vmatprep.subr.mxu0 0.0
    %169 = vmatpush1.msra.mxu0 %v144
    %170 = vmatprep.subr.mxu0 0.0
    %171 = vmatpush1.msra.mxu0 %v145
    %172 = vmatprep.subr.mxu0 0.0
    %173 = vmatpush1.msra.mxu0 %v146
    %174 = vmatprep.subr.mxu0 0.0
    %175 = vmatpush1.msra.mxu0 %v147
    %176 = vmatprep.subr.mxu0 0.0
    %177 = vmatpush1.msra.mxu0 %v148
    %178 = vmatprep.subr.mxu0 0.0
    %179 = vmatpush1.msra.mxu0 %v149
    %180 = vmatprep.subr.mxu0 0.0
    %181 = vmatpush1.msra.mxu0 %v150
    %182 = vmatprep.subr.mxu0 0.0
    %183 = vmatpush1.msra.mxu0 %v151
    %184 = vmatprep.subr.mxu0 0.0
    %185 = vmatpush1.msra.mxu0 %v152
    %186 = vmatprep.subr.mxu0 0.0
    %187 = vmatpush1.msra.mxu0 %v153
    %188 = vmatprep.subr.mxu0 0.0
    %189 = vmatpush1.msra.mxu0 %v154
    %190 = vmatprep.subr.mxu0 0.0
    %191 = vmatpush1.msra.mxu0 0.0
    %192 = vmatprep.subr.mxu0 0.0
    %193 = vmatpush1.msra.mxu0 0.0
    %194 = vmatprep.subr.mxu0 0.0
    %195 = vmatpush1.msra.mxu0 0.0
    %196 = vmatprep.subr.mxu0 0.0
    %197 = vmatpush1.msra.mxu0 0.0
    %198 = vmatprep.subr.mxu0 0.0
    %199 = vmatpush1.msra.mxu0 0.0
    %200 = vmatprep.subr.mxu0 0.0
    %201 = vmatpush1.msra.mxu0 0.0
    %202 = vmatprep.subr.mxu0 0.0
    %203 = vmatpush1.msra.mxu0 0.0
    %204 = vmatprep.subr.mxu0 0.0
    %205 = vmatpush1.msra.mxu0 0.0
    %206 = vmatprep.subr.mxu0 0.0
    %207 = vmatpush1.msra.mxu0 0.0
    %208 = vmatprep.subr.mxu0 0.0
    %209 = vmatpush1.msra.mxu0 0.0
    %210 = vmatprep.subr.mxu0 0.0
    %211 = vmatpush1.msra.mxu0 0.0
    %212 = vmatprep.subr.mxu0 0.0
    %213 = vmatpush1.msra.mxu0 0.0
    %214 = vmatprep.subr.mxu0 0.0
    %215 = vmatpush1.msra.mxu0 0.0
    %216 = vmatprep.subr.mxu0 0.0
    %217 = vmatpush1.msra.mxu0 0.0
    %218 = vmatprep.subr.mxu0 0.0
    %219 = vmatpush1.msra.mxu0 0.0
    %220 = vmatprep.subr.mxu0 0.0
    %221 = vmatpush1.msra.mxu0 0.0
    %222 = vmatprep.mubr.f32.mxu0 0.0
    %223 = vmatmul.mubr.f32.gmra.mrb[0].mxu0 %v156
    %v224 = vpop.f32.mrb[0].mxu0
    %v225 = vadd.f32 0.0, %v224
    %v226 = vpop.f32.mrb[0].mxu0
    %227 = vdwg.mxu0
    %228 = vmatprep.subr.mxu0 0.0
    %229 = vmatpush1.msra.mxu0 %v122
    %230 = vmatprep.subr.mxu0 0.0
    %231 = vmatpush1.msra.mxu0 %v123
    %232 = vmatprep.subr.mxu0 0.0
    %233 = vmatpush1.msra.mxu0 %v124
    %234 = vmatprep.subr.mxu0 0.0
    %235 = vmatpush1.msra.mxu0 %v125
    %236 = vmatprep.subr.mxu0 0.0
    %237 = vmatpush1.msra.mxu0 %v126
    %238 = vmatprep.subr.mxu0 0.0
    %239 = vmatpush1.msra.mxu0 %v127
    %240 = vmatprep.subr.mxu0 0.0
    %241 = vmatpush1.msra.mxu0 %v128
    %242 = vmatprep.subr.mxu0 0.0
    %243 = vmatpush1.msra.mxu0 %v129
    %244 = vmatprep.subr.mxu0 0.0
    %245 = vmatpush1.msra.mxu0 %v130
    %246 = vmatprep.subr.mxu0 0.0
    %247 = vmatpush1.msra.mxu0 %v131
    %248 = vmatprep.subr.mxu0 0.0
    %249 = vmatpush1.msra.mxu0 %v132
    %250 = vmatprep.subr.mxu0 0.0
    %251 = vmatpush1.msra.mxu0 %v133
    %252 = vmatprep.subr.mxu0 0.0
    %253 = vmatpush1.msra.mxu0 %v134
    %254 = vmatprep.subr.mxu0 0.0
    %255 = vmatpush1.msra.mxu0 %v135
    %256 = vmatprep.subr.mxu0 0.0
    %257 = vmatpush1.msra.mxu0 %v136
    %258 = vmatprep.subr.mxu0 0.0
    %259 = vmatpush1.msra.mxu0 %v137
    %260 = vmatprep.subr.mxu0 0.0
    %261 = vmatpush1.msra.mxu0 0.0
    %262 = vmatprep.subr.mxu0 0.0
    %263 = vmatpush1.msra.mxu0 0.0
    %264 = vmatprep.subr.mxu0 0.0
    %265 = vmatpush1.msra.mxu0 0.0
    %266 = vmatprep.subr.mxu0 0.0
    %267 = vmatpush1.msra.mxu0 0.0
    %268 = vmatprep.subr.mxu0 0.0
    %269 = vmatpush1.msra.mxu0 0.0
    %270 = vmatprep.subr.mxu0 0.0
    %271 = vmatpush1.msra.mxu0 0.0
    %272 = vmatprep.subr.mxu0 0.0
    %273 = vmatpush1.msra.mxu0 0.0
    %274 = vmatprep.subr.mxu0 0.0
    %275 = vmatpush1.msra.mxu0 0.0
    %276 = vmatprep.subr.mxu0 0.0
    %277 = vmatpush1.msra.mxu0 0.0
    %278 = vmatprep.subr.mxu0 0.0
    %279 = vmatpush1.msra.mxu0 0.0
    %280 = vmatprep.subr.mxu0 0.0
    %281 = vmatpush1.msra.mxu0 0.0
    %282 = vmatprep.subr.mxu0 0.0
    %283 = vmatpush1.msra.mxu0 0.0
    %284 = vmatprep.subr.mxu0 0.0
    %285 = vmatpush1.msra.mxu0 0.0
    %286 = vmatprep.subr.mxu0 0.0
    %287 = vmatpush1.msra.mxu0 0.0
    %288 = vmatprep.subr.mxu0 0.0
    %289 = vmatpush1.msra.mxu0 0.0
    %290 = vmatprep.subr.mxu0 0.0
    %291 = vmatpush1.msra.mxu0 0.0
    %292 = vmatprep.mubr.f32.mxu0 0.0
    %293 = vmatmul.mubr.f32.gmra.mrb[0].mxu0 %v121
    %v294 = vpop.f32.mrb[0].mxu0
    %v295 = vadd.f32 %v225, %v294
    %v296 = vpop.f32.mrb[0].mxu0
    %297 = vdwg.mxu0
    %s298 = scalar_lea.vmem %s3, 256
    %v299 = vld [vmem:[%s298] sm:$0xff]
    %v300 = vld [vmem:[%s298 + $0x8] sm:$0xff]
    %v301 = vld [vmem:[%s298 + $0x10] sm:$0xff]
    %v302 = vld [vmem:[%s298 + $0x18] sm:$0xff]
    %v303 = vld [vmem:[%s298 + $0x20] sm:$0xff]
    %v304 = vld [vmem:[%s298 + $0x28] sm:$0xff]
    %v305 = vld [vmem:[%s298 + $0x30] sm:$0xff]
    %v306 = vld [vmem:[%s298 + $0x38] sm:$0xff]
    %v307 = vld [vmem:[%s298 + $0x40] sm:$0xff]
    %v308 = vld [vmem:[%s298 + $0x48] sm:$0xff]
    %v309 = vld [vmem:[%s298 + $0x50] sm:$0xff]
    %v310 = vld [vmem:[%s298 + $0x58] sm:$0xff]
    %v311 = vld [vmem:[%s298 + $0x60] sm:$0xff]
    %v312 = vld [vmem:[%s298 + $0x68] sm:$0xff]
    %v313 = vld [vmem:[%s298 + $0x70] sm:$0xff]
    %v314 = vld [vmem:[%s298 + $0x78] sm:$0xff]
    %v315 = vrot.slane %v121, 2
    %317 = vmatprep.subr.mxu0 0.0
    %318 = vmatpush1.msra.mxu0 %v299
    %319 = vmatprep.subr.mxu0 0.0
    %320 = vmatpush1.msra.mxu0 %v300
    %321 = vmatprep.subr.mxu0 0.0
    %322 = vmatpush1.msra.mxu0 %v301
    %323 = vmatprep.subr.mxu0 0.0
    %324 = vmatpush1.msra.mxu0 %v302
    %325 = vmatprep.subr.mxu0 0.0
    %326 = vmatpush1.msra.mxu0 %v303
    %327 = vmatprep.subr.mxu0 0.0
    %328 = vmatpush1.msra.mxu0 %v304
    %329 = vmatprep.subr.mxu0 0.0
    %330 = vmatpush1.msra.mxu0 %v305
    %331 = vmatprep.subr.mxu0 0.0
    %332 = vmatpush1.msra.mxu0 %v306
    %333 = vmatprep.subr.mxu0 0.0
    %334 = vmatpush1.msra.mxu0 %v307
    %335 = vmatprep.subr.mxu0 0.0
    %336 = vmatpush1.msra.mxu0 %v308
    %337 = vmatprep.subr.mxu0 0.0
    %338 = vmatpush1.msra.mxu0 %v309
    %339 = vmatprep.subr.mxu0 0.0
    %340 = vmatpush1.msra.mxu0 %v310
    %341 = vmatprep.subr.mxu0 0.0
    %342 = vmatpush1.msra.mxu0 %v311
    %343 = vmatprep.subr.mxu0 0.0
    %344 = vmatpush1.msra.mxu0 %v312
    %345 = vmatprep.subr.mxu0 0.0
    %346 = vmatpush1.msra.mxu0 %v313
    %347 = vmatprep.subr.mxu0 0.0
    %348 = vmatpush1.msra.mxu0 %v314
    %349 = vmatprep.subr.mxu0 0.0
    %350 = vmatpush1.msra.mxu0 0.0
    %351 = vmatprep.subr.mxu0 0.0
    %352 = vmatpush1.msra.mxu0 0.0
    %353 = vmatprep.subr.mxu0 0.0
    %354 = vmatpush1.msra.mxu0 0.0
    %355 = vmatprep.subr.mxu0 0.0
    %356 = vmatpush1.msra.mxu0 0.0
    %357 = vmatprep.subr.mxu0 0.0
    %358 = vmatpush1.msra.mxu0 0.0
    %359 = vmatprep.subr.mxu0 0.0
    %360 = vmatpush1.msra.mxu0 0.0
    %361 = vmatprep.subr.mxu0 0.0
    %362 = vmatpush1.msra.mxu0 0.0
    %363 = vmatprep.subr.mxu0 0.0
    %364 = vmatpush1.msra.mxu0 0.0
    %365 = vmatprep.subr.mxu0 0.0
    %366 = vmatpush1.msra.mxu0 0.0
    %367 = vmatprep.subr.mxu0 0.0
    %368 = vmatpush1.msra.mxu0 0.0
    %369 = vmatprep.subr.mxu0 0.0
    %370 = vmatpush1.msra.mxu0 0.0
    %371 = vmatprep.subr.mxu0 0.0
    %372 = vmatpush1.msra.mxu0 0.0
    %373 = vmatprep.subr.mxu0 0.0
    %374 = vmatpush1.msra.mxu0 0.0
    %375 = vmatprep.subr.mxu0 0.0
    %376 = vmatpush1.msra.mxu0 0.0
    %377 = vmatprep.subr.mxu0 0.0
    %378 = vmatpush1.msra.mxu0 0.0
    %379 = vmatprep.subr.mxu0 0.0
    %380 = vmatpush1.msra.mxu0 0.0
    %381 = vmatprep.mubr.f32.mxu0 0.0
    %382 = vmatmul.mubr.f32.gmra.mrb[0].mxu0 %v315
    %v383 = vpop.f32.mrb[0].mxu0
    %v384 = vadd.f32 0.0, %v383
    %v385 = vpop.f32.mrb[0].mxu0
    %386 = vdwg.mxu0
    %v387 = vadd.f32 %v295, %v384
    %s388 = scalar_lea.vmem %s3, 384
    %v389 = vld [vmem:[%s388] sm:$0xff]
    %v390 = vld [vmem:[%s388 + $0x8] sm:$0xff]
    %v391 = vld [vmem:[%s388 + $0x10] sm:$0xff]
    %v392 = vld [vmem:[%s388 + $0x18] sm:$0xff]
    %v393 = vld [vmem:[%s388 + $0x20] sm:$0xff]
    %v394 = vld [vmem:[%s388 + $0x28] sm:$0xff]
    %v395 = vld [vmem:[%s388 + $0x30] sm:$0xff]
    %v396 = vld [vmem:[%s388 + $0x38] sm:$0xff]
    %v397 = vld [vmem:[%s388 + $0x40] sm:$0xff]
    %v398 = vld [vmem:[%s388 + $0x48] sm:$0xff]
    %v399 = vld [vmem:[%s388 + $0x50] sm:$0xff]
    %v400 = vld [vmem:[%s388 + $0x58] sm:$0xff]
    %v401 = vld [vmem:[%s388 + $0x60] sm:$0xff]
    %v402 = vld [vmem:[%s388 + $0x68] sm:$0xff]
    %v403 = vld [vmem:[%s388 + $0x70] sm:$0xff]
    %v404 = vld [vmem:[%s388 + $0x78] sm:$0xff]
    %v405 = vrot.slane %v121, 3
    %407 = vmatprep.subr.mxu0 0.0
    %408 = vmatpush1.msra.mxu0 %v389
    %409 = vmatprep.subr.mxu0 0.0
    %410 = vmatpush1.msra.mxu0 %v390
    %411 = vmatprep.subr.mxu0 0.0
    %412 = vmatpush1.msra.mxu0 %v391
    %413 = vmatprep.subr.mxu0 0.0
    %414 = vmatpush1.msra.mxu0 %v392
    %415 = vmatprep.subr.mxu0 0.0
    %416 = vmatpush1.msra.mxu0 %v393
    %417 = vmatprep.subr.mxu0 0.0
    %418 = vmatpush1.msra.mxu0 %v394
    %419 = vmatprep.subr.mxu0 0.0
    %420 = vmatpush1.msra.mxu0 %v395
    %421 = vmatprep.subr.mxu0 0.0
    %422 = vmatpush1.msra.mxu0 %v396
    %423 = vmatprep.subr.mxu0 0.0
    %424 = vmatpush1.msra.mxu0 %v397
    %425 = vmatprep.subr.mxu0 0.0
    %426 = vmatpush1.msra.mxu0 %v398
    %427 = vmatprep.subr.mxu0 0.0
    %428 = vmatpush1.msra.mxu0 %v399
    %429 = vmatprep.subr.mxu0 0.0
    %430 = vmatpush1.msra.mxu0 %v400
    %431 = vmatprep.subr.mxu0 0.0
    %432 = vmatpush1.msra.mxu0 %v401
    %433 = vmatprep.subr.mxu0 0.0
    %434 = vmatpush1.msra.mxu0 %v402
    %435 = vmatprep.subr.mxu0 0.0
    %436 = vmatpush1.msra.mxu0 %v403
    %437 = vmatprep.subr.mxu0 0.0
    %438 = vmatpush1.msra.mxu0 %v404
    %439 = vmatprep.subr.mxu0 0.0
    %440 = vmatpush1.msra.mxu0 0.0
    %441 = vmatprep.subr.mxu0 0.0
    %442 = vmatpush1.msra.mxu0 0.0
    %443 = vmatprep.subr.mxu0 0.0
    %444 = vmatpush1.msra.mxu0 0.0
    %445 = vmatprep.subr.mxu0 0.0
    %446 = vmatpush1.msra.mxu0 0.0
    %447 = vmatprep.subr.mxu0 0.0
    %448 = vmatpush1.msra.mxu0 0.0
    %449 = vmatprep.subr.mxu0 0.0
    %450 = vmatpush1.msra.mxu0 0.0
    %451 = vmatprep.subr.mxu0 0.0
    %452 = vmatpush1.msra.mxu0 0.0
    %453 = vmatprep.subr.mxu0 0.0
    %454 = vmatpush1.msra.mxu0 0.0
    %455 = vmatprep.subr.mxu0 0.0
    %456 = vmatpush1.msra.mxu0 0.0
    %457 = vmatprep.subr.mxu0 0.0
    %458 = vmatpush1.msra.mxu0 0.0
    %459 = vmatprep.subr.mxu0 0.0
    %460 = vmatpush1.msra.mxu0 0.0
    %461 = vmatprep.subr.mxu0 0.0
    %462 = vmatpush1.msra.mxu0 0.0
    %463 = vmatprep.subr.mxu0 0.0
    %464 = vmatpush1.msra.mxu0 0.0
    %465 = vmatprep.subr.mxu0 0.0
    %466 = vmatpush1.msra.mxu0 0.0
    %467 = vmatprep.subr.mxu0 0.0
    %468 = vmatpush1.msra.mxu0 0.0
    %469 = vmatprep.subr.mxu0 0.0
    %470 = vmatpush1.msra.mxu0 0.0
    %471 = vmatprep.mubr.f32.mxu0 0.0
    %472 = vmatmul.mubr.f32.gmra.mrb[0].mxu0 %v405
    %v473 = vpop.f32.mrb[0].mxu0
    %v474 = vadd.f32 0.0, %v473
    %v475 = vpop.f32.mrb[0].mxu0
    %476 = vdwg.mxu0
    %v477 = vadd.f32 %v387, %v474
    %s478 = scalar_lea.vmem %s3, 512
    %v479 = vld [vmem:[%s478] sm:$0xff]
    %v480 = vld [vmem:[%s478 + $0x8] sm:$0xff]
    %v481 = vld [vmem:[%s478 + $0x10] sm:$0xff]
    %v482 = vld [vmem:[%s478 + $0x18] sm:$0xff]
    %v483 = vld [vmem:[%s478 + $0x20] sm:$0xff]
    %v484 = vld [vmem:[%s478 + $0x28] sm:$0xff]
    %v485 = vld [vmem:[%s478 + $0x30] sm:$0xff]
    %v486 = vld [vmem:[%s478 + $0x38] sm:$0xff]
    %v487 = vld [vmem:[%s478 + $0x40] sm:$0xff]
    %v488 = vld [vmem:[%s478 + $0x48] sm:$0xff]
    %v489 = vld [vmem:[%s478 + $0x50] sm:$0xff]
    %v490 = vld [vmem:[%s478 + $0x58] sm:$0xff]
    %v491 = vld [vmem:[%s478 + $0x60] sm:$0xff]
    %v492 = vld [vmem:[%s478 + $0x68] sm:$0xff]
    %v493 = vld [vmem:[%s478 + $0x70] sm:$0xff]
    %v494 = vld [vmem:[%s478 + $0x78] sm:$0xff]
    %v495 = vrot.slane %v121, 4
    %497 = vmatprep.subr.mxu0 0.0
    %498 = vmatpush1.msra.mxu0 %v479
    %499 = vmatprep.subr.mxu0 0.0
    %500 = vmatpush1.msra.mxu0 %v480
    %501 = vmatprep.subr.mxu0 0.0
    %502 = vmatpush1.msra.mxu0 %v481
    %503 = vmatprep.subr.mxu0 0.0
    %504 = vmatpush1.msra.mxu0 %v482
    %505 = vmatprep.subr.mxu0 0.0
    %506 = vmatpush1.msra.mxu0 %v483
    %507 = vmatprep.subr.mxu0 0.0
    %508 = vmatpush1.msra.mxu0 %v484
    %509 = vmatprep.subr.mxu0 0.0
    %510 = vmatpush1.msra.mxu0 %v485
    %511 = vmatprep.subr.mxu0 0.0
    %512 = vmatpush1.msra.mxu0 %v486
    %513 = vmatprep.subr.mxu0 0.0
    %514 = vmatpush1.msra.mxu0 %v487
    %515 = vmatprep.subr.mxu0 0.0
    %516 = vmatpush1.msra.mxu0 %v488
    %517 = vmatprep.subr.mxu0 0.0
    %518 = vmatpush1.msra.mxu0 %v489
    %519 = vmatprep.subr.mxu0 0.0
    %520 = vmatpush1.msra.mxu0 %v490
    %521 = vmatprep.subr.mxu0 0.0
    %522 = vmatpush1.msra.mxu0 %v491
    %523 = vmatprep.subr.mxu0 0.0
    %524 = vmatpush1.msra.mxu0 %v492
    %525 = vmatprep.subr.mxu0 0.0
    %526 = vmatpush1.msra.mxu0 %v493
    %527 = vmatprep.subr.mxu0 0.0
    %528 = vmatpush1.msra.mxu0 %v494
    %529 = vmatprep.subr.mxu0 0.0
    %530 = vmatpush1.msra.mxu0 0.0
    %531 = vmatprep.subr.mxu0 0.0
    %532 = vmatpush1.msra.mxu0 0.0
    %533 = vmatprep.subr.mxu0 0.0
    %534 = vmatpush1.msra.mxu0 0.0
    %535 = vmatprep.subr.mxu0 0.0
    %536 = vmatpush1.msra.mxu0 0.0
    %537 = vmatprep.subr.mxu0 0.0
    %538 = vmatpush1.msra.mxu0 0.0
    %539 = vmatprep.subr.mxu0 0.0
    %540 = vmatpush1.msra.mxu0 0.0
    %541 = vmatprep.subr.mxu0 0.0
    %542 = vmatpush1.msra.mxu0 0.0
    %543 = vmatprep.subr.mxu0 0.0
    %544 = vmatpush1.msra.mxu0 0.0
    %545 = vmatprep.subr.mxu0 0.0
    %546 = vmatpush1.msra.mxu0 0.0
    %547 = vmatprep.subr.mxu0 0.0
    %548 = vmatpush1.msra.mxu0 0.0
    %549 = vmatprep.subr.mxu0 0.0
    %550 = vmatpush1.msra.mxu0 0.0
    %551 = vmatprep.subr.mxu0 0.0
    %552 = vmatpush1.msra.mxu0 0.0
    %553 = vmatprep.subr.mxu0 0.0
    %554 = vmatpush1.msra.mxu0 0.0
    %555 = vmatprep.subr.mxu0 0.0
    %556 = vmatpush1.msra.mxu0 0.0
    %557 = vmatprep.subr.mxu0 0.0
    %558 = vmatpush1.msra.mxu0 0.0
    %559 = vmatprep.subr.mxu0 0.0
    %560 = vmatpush1.msra.mxu0 0.0
    %561 = vmatprep.mubr.f32.mxu0 0.0
    %562 = vmatmul.mubr.f32.gmra.mrb[0].mxu0 %v495
    %v563 = vpop.f32.mrb[0].mxu0
    %v564 = vadd.f32 0.0, %v563
    %v565 = vpop.f32.mrb[0].mxu0
    %566 = vdwg.mxu0
    %v567 = vadd.f32 %v477, %v564
    %s568 = scalar_lea.vmem %s3, 640
    %v569 = vld [vmem:[%s568] sm:$0xff]
    %v570 = vld [vmem:[%s568 + $0x8] sm:$0xff]
    %v571 = vld [vmem:[%s568 + $0x10] sm:$0xff]
    %v572 = vld [vmem:[%s568 + $0x18] sm:$0xff]
    %v573 = vld [vmem:[%s568 + $0x20] sm:$0xff]
    %v574 = vld [vmem:[%s568 + $0x28] sm:$0xff]
    %v575 = vld [vmem:[%s568 + $0x30] sm:$0xff]
    %v576 = vld [vmem:[%s568 + $0x38] sm:$0xff]
    %v577 = vld [vmem:[%s568 + $0x40] sm:$0xff]
    %v578 = vld [vmem:[%s568 + $0x48] sm:$0xff]
    %v579 = vld [vmem:[%s568 + $0x50] sm:$0xff]
    %v580 = vld [vmem:[%s568 + $0x58] sm:$0xff]
    %v581 = vld [vmem:[%s568 + $0x60] sm:$0xff]
    %v582 = vld [vmem:[%s568 + $0x68] sm:$0xff]
    %v583 = vld [vmem:[%s568 + $0x70] sm:$0xff]
    %v584 = vld [vmem:[%s568 + $0x78] sm:$0xff]
    %v585 = vrot.slane %v121, 5
    %587 = vmatprep.subr.mxu0 0.0
    %588 = vmatpush1.msra.mxu0 %v569
    %589 = vmatprep.subr.mxu0 0.0
    %590 = vmatpush1.msra.mxu0 %v570
    %591 = vmatprep.subr.mxu0 0.0
    %592 = vmatpush1.msra.mxu0 %v571
    %593 = vmatprep.subr.mxu0 0.0
    %594 = vmatpush1.msra.mxu0 %v572
    %595 = vmatprep.subr.mxu0 0.0
    %596 = vmatpush1.msra.mxu0 %v573
    %597 = vmatprep.subr.mxu0 0.0
    %598 = vmatpush1.msra.mxu0 %v574
    %599 = vmatprep.subr.mxu0 0.0
    %600 = vmatpush1.msra.mxu0 %v575
    %601 = vmatprep.subr.mxu0 0.0
    %602 = vmatpush1.msra.mxu0 %v576
    %603 = vmatprep.subr.mxu0 0.0
    %604 = vmatpush1.msra.mxu0 %v577
    %605 = vmatprep.subr.mxu0 0.0
    %606 = vmatpush1.msra.mxu0 %v578
    %607 = vmatprep.subr.mxu0 0.0
    %608 = vmatpush1.msra.mxu0 %v579
    %609 = vmatprep.subr.mxu0 0.0
    %610 = vmatpush1.msra.mxu0 %v580
    %611 = vmatprep.subr.mxu0 0.0
    %612 = vmatpush1.msra.mxu0 %v581
    %613 = vmatprep.subr.mxu0 0.0
    %614 = vmatpush1.msra.mxu0 %v582
    %615 = vmatprep.subr.mxu0 0.0
    %616 = vmatpush1.msra.mxu0 %v583
    %617 = vmatprep.subr.mxu0 0.0
    %618 = vmatpush1.msra.mxu0 %v584
    %619 = vmatprep.subr.mxu0 0.0
    %620 = vmatpush1.msra.mxu0 0.0
    %621 = vmatprep.subr.mxu0 0.0
    %622 = vmatpush1.msra.mxu0 0.0
    %623 = vmatprep.subr.mxu0 0.0
    %624 = vmatpush1.msra.mxu0 0.0
    %625 = vmatprep.subr.mxu0 0.0
    %626 = vmatpush1.msra.mxu0 0.0
    %627 = vmatprep.subr.mxu0 0.0
    %628 = vmatpush1.msra.mxu0 0.0
    %629 = vmatprep.subr.mxu0 0.0
    %630 = vmatpush1.msra.mxu0 0.0
    %631 = vmatprep.subr.mxu0 0.0
    %632 = vmatpush1.msra.mxu0 0.0
    %633 = vmatprep.subr.mxu0 0.0
    %634 = vmatpush1.msra.mxu0 0.0
    %635 = vmatprep.subr.mxu0 0.0
    %636 = vmatpush1.msra.mxu0 0.0
    %637 = vmatprep.subr.mxu0 0.0
    %638 = vmatpush1.msra.mxu0 0.0
    %639 = vmatprep.subr.mxu0 0.0
    %640 = vmatpush1.msra.mxu0 0.0
    %641 = vmatprep.subr.mxu0 0.0
    %642 = vmatpush1.msra.mxu0 0.0
    %643 = vmatprep.subr.mxu0 0.0
    %644 = vmatpush1.msra.mxu0 0.0
    %645 = vmatprep.subr.mxu0 0.0
    %646 = vmatpush1.msra.mxu0 0.0
    %647 = vmatprep.subr.mxu0 0.0
    %648 = vmatpush1.msra.mxu0 0.0
    %649 = vmatprep.subr.mxu0 0.0
    %650 = vmatpush1.msra.mxu0 0.0
    %651 = vmatprep.mubr.f32.mxu0 0.0
    %652 = vmatmul.mubr.f32.gmra.mrb[0].mxu0 %v585
    %v653 = vpop.f32.mrb[0].mxu0
    %v654 = vadd.f32 0.0, %v653
    %v655 = vpop.f32.mrb[0].mxu0
    %656 = vdwg.mxu0
    %v657 = vadd.f32 %v567, %v654
    %s658 = scalar_lea.vmem %s3, 768
    %v659 = vld [vmem:[%s658] sm:$0xff]
    %v660 = vld [vmem:[%s658 + $0x8] sm:$0xff]
    %v661 = vld [vmem:[%s658 + $0x10] sm:$0xff]
    %v662 = vld [vmem:[%s658 + $0x18] sm:$0xff]
    %v663 = vld [vmem:[%s658 + $0x20] sm:$0xff]
    %v664 = vld [vmem:[%s658 + $0x28] sm:$0xff]
    %v665 = vld [vmem:[%s658 + $0x30] sm:$0xff]
    %v666 = vld [vmem:[%s658 + $0x38] sm:$0xff]
    %v667 = vld [vmem:[%s658 + $0x40] sm:$0xff]
    %v668 = vld [vmem:[%s658 + $0x48] sm:$0xff]
    %v669 = vld [vmem:[%s658 + $0x50] sm:$0xff]
    %v670 = vld [vmem:[%s658 + $0x58] sm:$0xff]
    %v671 = vld [vmem:[%s658 + $0x60] sm:$0xff]
    %v672 = vld [vmem:[%s658 + $0x68] sm:$0xff]
    %v673 = vld [vmem:[%s658 + $0x70] sm:$0xff]
    %v674 = vld [vmem:[%s658 + $0x78] sm:$0xff]
    %v675 = vrot.slane %v121, 6
    %677 = vmatprep.subr.mxu0 0.0
    %678 = vmatpush1.msra.mxu0 %v659
    %679 = vmatprep.subr.mxu0 0.0
    %680 = vmatpush1.msra.mxu0 %v660
    %681 = vmatprep.subr.mxu0 0.0
    %682 = vmatpush1.msra.mxu0 %v661
    %683 = vmatprep.subr.mxu0 0.0
    %684 = vmatpush1.msra.mxu0 %v662
    %685 = vmatprep.subr.mxu0 0.0
    %686 = vmatpush1.msra.mxu0 %v663
    %687 = vmatprep.subr.mxu0 0.0
    %688 = vmatpush1.msra.mxu0 %v664
    %689 = vmatprep.subr.mxu0 0.0
    %690 = vmatpush1.msra.mxu0 %v665
    %691 = vmatprep.subr.mxu0 0.0
    %692 = vmatpush1.msra.mxu0 %v666
    %693 = vmatprep.subr.mxu0 0.0
    %694 = vmatpush1.msra.mxu0 %v667
    %695 = vmatprep.subr.mxu0 0.0
    %696 = vmatpush1.msra.mxu0 %v668
    %697 = vmatprep.subr.mxu0 0.0
    %698 = vmatpush1.msra.mxu0 %v669
    %699 = vmatprep.subr.mxu0 0.0
    %700 = vmatpush1.msra.mxu0 %v670
    %701 = vmatprep.subr.mxu0 0.0
    %702 = vmatpush1.msra.mxu0 %v671
    %703 = vmatprep.subr.mxu0 0.0
    %704 = vmatpush1.msra.mxu0 %v672
    %705 = vmatprep.subr.mxu0 0.0
    %706 = vmatpush1.msra.mxu0 %v673
    %707 = vmatprep.subr.mxu0 0.0
    %708 = vmatpush1.msra.mxu0 %v674
    %709 = vmatprep.subr.mxu0 0.0
    %710 = vmatpush1.msra.mxu0 0.0
    %711 = vmatprep.subr.mxu0 0.0
    %712 = vmatpush1.msra.mxu0 0.0
    %713 = vmatprep.subr.mxu0 0.0
    %714 = vmatpush1.msra.mxu0 0.0
    %715 = vmatprep.subr.mxu0 0.0
    %716 = vmatpush1.msra.mxu0 0.0
    %717 = vmatprep.subr.mxu0 0.0
    %718 = vmatpush1.msra.mxu0 0.0
    %719 = vmatprep.subr.mxu0 0.0
    %720 = vmatpush1.msra.mxu0 0.0
    %721 = vmatprep.subr.mxu0 0.0
    %722 = vmatpush1.msra.mxu0 0.0
    %723 = vmatprep.subr.mxu0 0.0
    %724 = vmatpush1.msra.mxu0 0.0
    %725 = vmatprep.subr.mxu0 0.0
    %726 = vmatpush1.msra.mxu0 0.0
    %727 = vmatprep.subr.mxu0 0.0
    %728 = vmatpush1.msra.mxu0 0.0
    %729 = vmatprep.subr.mxu0 0.0
    %730 = vmatpush1.msra.mxu0 0.0
    %731 = vmatprep.subr.mxu0 0.0
    %732 = vmatpush1.msra.mxu0 0.0
    %733 = vmatprep.subr.mxu0 0.0
    %734 = vmatpush1.msra.mxu0 0.0
    %735 = vmatprep.subr.mxu0 0.0
    %736 = vmatpush1.msra.mxu0 0.0
    %737 = vmatprep.subr.mxu0 0.0
    %738 = vmatpush1.msra.mxu0 0.0
    %739 = vmatprep.subr.mxu0 0.0
    %740 = vmatpush1.msra.mxu0 0.0
    %741 = vmatprep.mubr.f32.mxu0 0.0
    %742 = vmatmul.mubr.f32.gmra.mrb[0].mxu0 %v675
    %v743 = vpop.f32.mrb[0].mxu0
    %v744 = vadd.f32 0.0, %v743
    %v745 = vpop.f32.mrb[0].mxu0
    %746 = vdwg.mxu0
    %v747 = vadd.f32 %v657, %v744
    %s748 = scalar_lea.vmem %s3, 896
    %v749 = vld [vmem:[%s748] sm:$0xff]
    %v750 = vld [vmem:[%s748 + $0x8] sm:$0xff]
    %v751 = vld [vmem:[%s748 + $0x10] sm:$0xff]
    %v752 = vld [vmem:[%s748 + $0x18] sm:$0xff]
    %v753 = vld [vmem:[%s748 + $0x20] sm:$0xff]
    %v754 = vld [vmem:[%s748 + $0x28] sm:$0xff]
    %v755 = vld [vmem:[%s748 + $0x30] sm:$0xff]
    %v756 = vld [vmem:[%s748 + $0x38] sm:$0xff]
    %v757 = vld [vmem:[%s748 + $0x40] sm:$0xff]
    %v758 = vld [vmem:[%s748 + $0x48] sm:$0xff]
    %v759 = vld [vmem:[%s748 + $0x50] sm:$0xff]
    %v760 = vld [vmem:[%s748 + $0x58] sm:$0xff]
    %v761 = vld [vmem:[%s748 + $0x60] sm:$0xff]
    %v762 = vld [vmem:[%s748 + $0x68] sm:$0xff]
    %v763 = vld [vmem:[%s748 + $0x70] sm:$0xff]
    %v764 = vld [vmem:[%s748 + $0x78] sm:$0xff]
    %v765 = vrot.slane %v121, 7
    %767 = vmatprep.subr.mxu0 0.0
    %768 = vmatpush1.msra.mxu0 %v749
    %769 = vmatprep.subr.mxu0 0.0
    %770 = vmatpush1.msra.mxu0 %v750
    %771 = vmatprep.subr.mxu0 0.0
    %772 = vmatpush1.msra.mxu0 %v751
    %773 = vmatprep.subr.mxu0 0.0
    %774 = vmatpush1.msra.mxu0 %v752
    %775 = vmatprep.subr.mxu0 0.0
    %776 = vmatpush1.msra.mxu0 %v753
    %777 = vmatprep.subr.mxu0 0.0
    %778 = vmatpush1.msra.mxu0 %v754
    %779 = vmatprep.subr.mxu0 0.0
    %780 = vmatpush1.msra.mxu0 %v755
    %781 = vmatprep.subr.mxu0 0.0
    %782 = vmatpush1.msra.mxu0 %v756
    %783 = vmatprep.subr.mxu0 0.0
    %784 = vmatpush1.msra.mxu0 %v757
    %785 = vmatprep.subr.mxu0 0.0
    %786 = vmatpush1.msra.mxu0 %v758
    %787 = vmatprep.subr.mxu0 0.0
    %788 = vmatpush1.msra.mxu0 %v759
    %789 = vmatprep.subr.mxu0 0.0
    %790 = vmatpush1.msra.mxu0 %v760
    %791 = vmatprep.subr.mxu0 0.0
    %792 = vmatpush1.msra.mxu0 %v761
    %793 = vmatprep.subr.mxu0 0.0
    %794 = vmatpush1.msra.mxu0 %v762
    %795 = vmatprep.subr.mxu0 0.0
    %796 = vmatpush1.msra.mxu0 %v763
    %797 = vmatprep.subr.mxu0 0.0
    %798 = vmatpush1.msra.mxu0 %v764
    %799 = vmatprep.subr.mxu0 0.0
    %800 = vmatpush1.msra.mxu0 0.0
    %801 = vmatprep.subr.mxu0 0.0
    %802 = vmatpush1.msra.mxu0 0.0
    %803 = vmatprep.subr.mxu0 0.0
    %804 = vmatpush1.msra.mxu0 0.0
    %805 = vmatprep.subr.mxu0 0.0
    %806 = vmatpush1.msra.mxu0 0.0
    %807 = vmatprep.subr.mxu0 0.0
    %808 = vmatpush1.msra.mxu0 0.0
    %809 = vmatprep.subr.mxu0 0.0
    %810 = vmatpush1.msra.mxu0 0.0
    %811 = vmatprep.subr.mxu0 0.0
    %812 = vmatpush1.msra.mxu0 0.0
    %813 = vmatprep.subr.mxu0 0.0
    %814 = vmatpush1.msra.mxu0 0.0
    %815 = vmatprep.subr.mxu0 0.0
    %816 = vmatpush1.msra.mxu0 0.0
    %817 = vmatprep.subr.mxu0 0.0
    %818 = vmatpush1.msra.mxu0 0.0
    %819 = vmatprep.subr.mxu0 0.0
    %820 = vmatpush1.msra.mxu0 0.0
    %821 = vmatprep.subr.mxu0 0.0
    %822 = vmatpush1.msra.mxu0 0.0
    %823 = vmatprep.subr.mxu0 0.0
    %824 = vmatpush1.msra.mxu0 0.0
    %825 = vmatprep.subr.mxu0 0.0
    %826 = vmatpush1.msra.mxu0 0.0
    %827 = vmatprep.subr.mxu0 0.0
    %828 = vmatpush1.msra.mxu0 0.0
    %829 = vmatprep.subr.mxu0 0.0
    %830 = vmatpush1.msra.mxu0 0.0
    %831 = vmatprep.mubr.f32.mxu0 0.0
    %832 = vmatmul.mubr.f32.gmra.mrb[0].mxu0 %v765
    %v833 = vpop.f32.mrb[0].mxu0
    %v834 = vadd.f32 0.0, %v833
    %v835 = vpop.f32.mrb[0].mxu0
    %836 = vdwg.mxu0
    %v837 = vadd.f32 %v747, %v834
    %s838 = sld [smem:[#allocation2]]
    %v839 = vstv %s838
    %v840 = vadd.f32 %v837, %v839
    %v841 = vld [vmem:[%s6] sm:$0x1]
    %v842 = vld [vmem:[%s5] sm:$0xff]
    %v843 = vld [vmem:[%s5 + $0x8] sm:$0xff]
    %v844 = vld [vmem:[%s5 + $0x10] sm:$0xff]
    %v845 = vld [vmem:[%s5 + $0x18] sm:$0xff]
    %v846 = vld [vmem:[%s5 + $0x20] sm:$0xff]
    %v847 = vld [vmem:[%s5 + $0x28] sm:$0xff]
    %v848 = vld [vmem:[%s5 + $0x30] sm:$0xff]
    %v849 = vld [vmem:[%s5 + $0x38] sm:$0xff]
    %v850 = vld [vmem:[%s5 + $0x40] sm:$0xff]
    %v851 = vld [vmem:[%s5 + $0x48] sm:$0xff]
    %v852 = vld [vmem:[%s5 + $0x50] sm:$0xff]
    %v853 = vld [vmem:[%s5 + $0x58] sm:$0xff]
    %s854 = sld [smem:[#allocation3]]
    %v855 = vstv %s854
    %v868 = vunpack.c.l.b16 %v842
    %v869 = vunpack.c.h.b16 %v842
    %v870 = vunpack.c.l.b16 %v843
    %v871 = vunpack.c.h.b16 %v843
    %v872 = vunpack.c.l.b16 %v844
    %v873 = vunpack.c.h.b16 %v844
    %v874 = vunpack.c.l.b16 %v845
    %v875 = vunpack.c.h.b16 %v845
    %v876 = vunpack.c.l.b16 %v846
    %v877 = vunpack.c.h.b16 %v846
    %v878 = vunpack.c.l.b16 %v847
    %v879 = vunpack.c.h.b16 %v847
    %v880 = vunpack.c.l.b16 %v848
    %v881 = vunpack.c.h.b16 %v848
    %v882 = vunpack.c.l.b16 %v849
    %v883 = vunpack.c.h.b16 %v849
    %v884 = vunpack.c.l.b16 %v850
    %v885 = vunpack.c.h.b16 %v850
    %v886 = vunpack.c.l.b16 %v851
    %v887 = vunpack.c.h.b16 %v851
    %v888 = vunpack.c.l.b16 %v852
    %v889 = vunpack.c.h.b16 %v852
    %v890 = vunpack.c.l.b16 %v853
    %v891 = vunpack.c.h.b16 %v853
    %v892 = vpack.c.b16 %v872, %v868
    %v893 = vpack.c.b16 %v873, %v869
    %v894 = vpack.c.b16 %v874, %v870
    %v895 = vpack.c.b16 %v875, %v871
    %v896 = vpack.c.b16 %v880, %v876
    %v897 = vpack.c.b16 %v881, %v877
    %v898 = vpack.c.b16 %v882, %v878
    %v899 = vpack.c.b16 %v883, %v879
    %v900 = vpack.c.b16 %v888, %v884
    %v901 = vpack.c.b16 %v889, %v885
    %v902 = vpack.c.b16 %v890, %v886
    %v903 = vpack.c.b16 %v891, %v887
    %vm916 = vcmask 392192
    %v918 = vsel %vm916, %v841, 0
    %920 = vmatprep.subr.bf16.mxu0 %v893
    %921 = vmatpush1.bf16.msra.mxu0 %v892
    %922 = vmatprep.subr.bf16.mxu0 %v897
    %923 = vmatpush1.bf16.msra.mxu0 %v896
    %924 = vmatprep.subr.bf16.mxu0 %v901
    %925 = vmatpush1.bf16.msra.mxu0 %v900
    %926 = vmatprep.subr.bf16.mxu0 0
    %927 = vmatpush1.bf16.msra.mxu0 0
    %928 = vmatprep.subr.bf16.mxu0 0
    %929 = vmatpush1.bf16.msra.mxu0 0
    %930 = vmatprep.subr.bf16.mxu0 0
    %931 = vmatpush1.bf16.msra.mxu0 0
    %932 = vmatprep.subr.bf16.mxu0 0
    %933 = vmatpush1.bf16.msra.mxu0 0
    %934 = vmatprep.subr.bf16.mxu0 0
    %935 = vmatpush1.bf16.msra.mxu0 0
    %936 = vmatprep.subr.bf16.mxu0 0
    %937 = vmatpush1.bf16.msra.mxu0 0
    %938 = vmatprep.subr.bf16.mxu0 0
    %939 = vmatpush1.bf16.msra.mxu0 0
    %940 = vmatprep.subr.bf16.mxu0 0
    %941 = vmatpush1.bf16.msra.mxu0 0
    %942 = vmatprep.subr.bf16.mxu0 0
    %943 = vmatpush1.bf16.msra.mxu0 0
    %944 = vmatprep.subr.bf16.mxu0 0
    %945 = vmatpush1.bf16.msra.mxu0 0
    %946 = vmatprep.subr.bf16.mxu0 0
    %947 = vmatpush1.bf16.msra.mxu0 0
    %948 = vmatprep.subr.bf16.mxu0 0
    %949 = vmatpush1.bf16.msra.mxu0 0
    %950 = vmatprep.subr.bf16.mxu0 0
    %951 = vmatpush1.bf16.msra.mxu0 0
    %952 = vmatprep.mubr.bf16.mxu0 0
    %953 = vmatmul.mubr.bf16.gmra.mrb[0].mxu0 %v918
    %v954 = vpop.f32.mrb[0].mxu0
    %v955 = vadd.f32 %v855, %v954
    %v956 = vpop.f32.mrb[0].mxu0
    %v957 = vadd.f32 %v855, %v956
    %v958 = vpop.f32.mrb[0].mxu0
    %v959 = vpop.f32.mrb[0].mxu0
    %960 = vdwg.mxu0
    %961 = vmatprep.subr.bf16.mxu0 %v895
    %962 = vmatpush1.bf16.msra.mxu0 %v894
    %963 = vmatprep.subr.bf16.mxu0 %v899
    %964 = vmatpush1.bf16.msra.mxu0 %v898
    %965 = vmatprep.subr.bf16.mxu0 %v903
    %966 = vmatpush1.bf16.msra.mxu0 %v902
    %967 = vmatprep.subr.bf16.mxu0 0
    %968 = vmatpush1.bf16.msra.mxu0 0
    %969 = vmatprep.subr.bf16.mxu0 0
    %970 = vmatpush1.bf16.msra.mxu0 0
    %971 = vmatprep.subr.bf16.mxu0 0
    %972 = vmatpush1.bf16.msra.mxu0 0
    %973 = vmatprep.subr.bf16.mxu0 0
    %974 = vmatpush1.bf16.msra.mxu0 0
    %975 = vmatprep.subr.bf16.mxu0 0
    %976 = vmatpush1.bf16.msra.mxu0 0
    %977 = vmatprep.subr.bf16.mxu0 0
    %978 = vmatpush1.bf16.msra.mxu0 0
    %979 = vmatprep.subr.bf16.mxu0 0
    %980 = vmatpush1.bf16.msra.mxu0 0
    %981 = vmatprep.subr.bf16.mxu0 0
    %982 = vmatpush1.bf16.msra.mxu0 0
    %983 = vmatprep.subr.bf16.mxu0 0
    %984 = vmatpush1.bf16.msra.mxu0 0
    %985 = vmatprep.subr.bf16.mxu0 0
    %986 = vmatpush1.bf16.msra.mxu0 0
    %987 = vmatprep.subr.bf16.mxu0 0
    %988 = vmatpush1.bf16.msra.mxu0 0
    %989 = vmatprep.subr.bf16.mxu0 0
    %990 = vmatpush1.bf16.msra.mxu0 0
    %991 = vmatprep.subr.bf16.mxu0 0
    %992 = vmatpush1.bf16.msra.mxu0 0
    %993 = vmatprep.mubr.bf16.mxu0 0
    %994 = vmatmul.mubr.bf16.gmra.mrb[0].mxu0 %v918
    %v995 = vpop.f32.mrb[0].mxu0
    %v996 = vadd.f32 %v855, %v995
    %v997 = vpop.f32.mrb[0].mxu0
    %v998 = vadd.f32 %v855, %v997
    %v999 = vpop.f32.mrb[0].mxu0
    %v1000 = vpop.f32.mrb[0].mxu0
    %1001 = vdwg.mxu0
    %v1002 = vxor.u32 %v955, 2147483648
    %v1003 = vxor.u32 %v957, 2147483648
    %v1004 = vxor.u32 %v996, 2147483648
    %v1005 = vxor.u32 %v998, 2147483648
    %v1006 = vmul.f32 %v1002, 1.442695
    %v1007 = vpow.pop %v1006
    %v1008 = vmul.f32 %v1003, 1.442695
    %v1009 = vpow.pop %v1008
    %v1010 = vmul.f32 %v1004, 1.442695
    %v1011 = vpow.pop %v1010
    %v1012 = vmul.f32 %v1005, 1.442695
    %v1013 = vpow.pop %v1012
    %v1014 = vadd.f32 %v1007, 1.0
    %v1015 = vadd.f32 %v1009, 1.0
    %v1016 = vadd.f32 %v1011, 1.0
    %v1017 = vadd.f32 %v1013, 1.0
    %v1018 = vrcp.pop %v1014
    %v1019 = vmul.f32 1.0, %v1018
    %v1020 = vrcp.pop %v1015
    %v1021 = vmul.f32 1.0, %v1020
    %v1022 = vrcp.pop %v1016
    %v1023 = vmul.f32 1.0, %v1022
    %v1024 = vrcp.pop %v1017
    %v1025 = vmul.f32 1.0, %v1024
    %v1026 = vld [vmem:[%s8] sm:$0xff]
    %v1027 = vld [vmem:[%s8 + $0x8] sm:$0xff]
    %v1028 = vld [vmem:[%s8 + $0x10] sm:$0xff]
    %v1029 = vld [vmem:[%s8 + $0x18] sm:$0xff]
    %v1030 = vld [vmem:[%s8 + $0x20] sm:$0xff]
    %v1031 = vld [vmem:[%s8 + $0x28] sm:$0xff]
    %v1032 = vld [vmem:[%s8 + $0x30] sm:$0xff]
    %v1033 = vld [vmem:[%s8 + $0x38] sm:$0xff]
    %v1034 = vld [vmem:[%s8 + $0x40] sm:$0xff]
    %v1035 = vld [vmem:[%s8 + $0x48] sm:$0xff]
    %v1036 = vld [vmem:[%s8 + $0x50] sm:$0xff]
    %v1037 = vld [vmem:[%s8 + $0x58] sm:$0xff]
    %v1038 = vld [vmem:[%s8 + $0x60] sm:$0xff]
    %v1039 = vld [vmem:[%s8 + $0x68] sm:$0xff]
    %v1040 = vld [vmem:[%s8 + $0x70] sm:$0xff]
    %v1041 = vld [vmem:[%s8 + $0x78] sm:$0xff]
    %v1042 = vld [vmem:[%s8 + $0x80] sm:$0xff]
    %v1043 = vld [vmem:[%s8 + $0x88] sm:$0xff]
    %v1044 = vld [vmem:[%s8 + $0x90] sm:$0xff]
    %v1045 = vld [vmem:[%s8 + $0x98] sm:$0xff]
    %v1046 = vld [vmem:[%s8 + $0xa0] sm:$0xff]
    %v1047 = vld [vmem:[%s8 + $0xa8] sm:$0xff]
    %v1048 = vld [vmem:[%s8 + $0xb0] sm:$0xff]
    %v1049 = vld [vmem:[%s8 + $0xb8] sm:$0xff]
    %v1050 = vld [vmem:[%s8 + $0xc0] sm:$0xff]
    %v1051 = vld [vmem:[%s8 + $0xc8] sm:$0xff]
    %v1052 = vld [vmem:[%s8 + $0xd0] sm:$0xff]
    %v1053 = vld [vmem:[%s8 + $0xd8] sm:$0xff]
    %v1054 = vld [vmem:[%s8 + $0xe0] sm:$0xff]
    %v1055 = vld [vmem:[%s8 + $0xe8] sm:$0xff]
    %v1056 = vld [vmem:[%s8 + $0xf0] sm:$0xff]
    %v1057 = vld [vmem:[%s8 + $0xf8] sm:$0xff]
    %v1058 = vld [vmem:[%s8 + $0x100] sm:$0xff]
    %v1059 = vld [vmem:[%s8 + $0x108] sm:$0xff]
    %v1060 = vld [vmem:[%s8 + $0x110] sm:$0xff]
    %v1061 = vld [vmem:[%s8 + $0x118] sm:$0xff]
    %v1062 = vld [vmem:[%s8 + $0x120] sm:$0xff]
    %v1063 = vld [vmem:[%s8 + $0x128] sm:$0xff]
    %v1064 = vld [vmem:[%s8 + $0x130] sm:$0xff]
    %v1065 = vld [vmem:[%s8 + $0x138] sm:$0xff]
    %v1066 = vld [vmem:[%s8 + $0x140] sm:$0xff]
    %v1067 = vld [vmem:[%s8 + $0x148] sm:$0xff]
    %v1068 = vld [vmem:[%s8 + $0x150] sm:$0xff]
    %v1069 = vld [vmem:[%s8 + $0x158] sm:$0xff]
    %v1070 = vld [vmem:[%s8 + $0x160] sm:$0xff]
    %v1071 = vld [vmem:[%s8 + $0x168] sm:$0xff]
    %v1072 = vld [vmem:[%s8 + $0x170] sm:$0xff]
    %v1073 = vld [vmem:[%s8 + $0x178] sm:$0xff]
    %v1074 = vld [vmem:[%s8 + $0x180] sm:$0xff]
    %v1075 = vld [vmem:[%s8 + $0x188] sm:$0xff]
    %v1076 = vld [vmem:[%s8 + $0x190] sm:$0xff]
    %v1077 = vld [vmem:[%s8 + $0x198] sm:$0xff]
    %v1078 = vld [vmem:[%s8 + $0x1a0] sm:$0xff]
    %v1079 = vld [vmem:[%s8 + $0x1a8] sm:$0xff]
    %v1080 = vld [vmem:[%s8 + $0x1b0] sm:$0xff]
    %v1081 = vld [vmem:[%s8 + $0x1b8] sm:$0xff]
    %v1082 = vld [vmem:[%s8 + $0x1c0] sm:$0xff]
    %v1083 = vld [vmem:[%s8 + $0x1c8] sm:$0xff]
    %v1084 = vld [vmem:[%s8 + $0x1d0] sm:$0xff]
    %v1085 = vld [vmem:[%s8 + $0x1d8] sm:$0xff]
    %v1086 = vld [vmem:[%s8 + $0x1e0] sm:$0xff]
    %v1087 = vld [vmem:[%s8 + $0x1e8] sm:$0xff]
    %v1088 = vld [vmem:[%s8 + $0x1f0] sm:$0xff]
    %v1089 = vld [vmem:[%s8 + $0x1f8] sm:$0xff]
    %1090 = vmatprep.subr.mxu0 0.0
    %1091 = vmatpush1.msra.mxu0 %v1026
    %1092 = vmatprep.subr.mxu0 0.0
    %1093 = vmatpush1.msra.mxu0 %v1027
    %1094 = vmatprep.subr.mxu0 0.0
    %1095 = vmatpush1.msra.mxu0 %v1028
    %1096 = vmatprep.subr.mxu0 0.0
    %1097 = vmatpush1.msra.mxu0 %v1029
    %1098 = vmatprep.subr.mxu0 0.0
    %1099 = vmatpush1.msra.mxu0 %v1030
    %1100 = vmatprep.subr.mxu0 0.0
    %1101 = vmatpush1.msra.mxu0 %v1031
    %1102 = vmatprep.subr.mxu0 0.0
    %1103 = vmatpush1.msra.mxu0 %v1032
    %1104 = vmatprep.subr.mxu0 0.0
    %1105 = vmatpush1.msra.mxu0 %v1033
    %1106 = vmatprep.subr.mxu0 0.0
    %1107 = vmatpush1.msra.mxu0 %v1034
    %1108 = vmatprep.subr.mxu0 0.0
    %1109 = vmatpush1.msra.mxu0 %v1035
    %1110 = vmatprep.subr.mxu0 0.0
    %1111 = vmatpush1.msra.mxu0 %v1036
    %1112 = vmatprep.subr.mxu0 0.0
    %1113 = vmatpush1.msra.mxu0 %v1037
    %1114 = vmatprep.subr.mxu0 0.0
    %1115 = vmatpush1.msra.mxu0 %v1038
    %1116 = vmatprep.subr.mxu0 0.0
    %1117 = vmatpush1.msra.mxu0 %v1039
    %1118 = vmatprep.subr.mxu0 0.0
    %1119 = vmatpush1.msra.mxu0 %v1040
    %1120 = vmatprep.subr.mxu0 0.0
    %1121 = vmatpush1.msra.mxu0 %v1041
    %1122 = vmatprep.subr.mxu0 0.0
    %1123 = vmatpush1.msra.mxu0 %v1042
    %1124 = vmatprep.subr.mxu0 0.0
    %1125 = vmatpush1.msra.mxu0 %v1043
    %1126 = vmatprep.subr.mxu0 0.0
    %1127 = vmatpush1.msra.mxu0 %v1044
    %1128 = vmatprep.subr.mxu0 0.0
    %1129 = vmatpush1.msra.mxu0 %v1045
    %1130 = vmatprep.subr.mxu0 0.0
    %1131 = vmatpush1.msra.mxu0 %v1046
    %1132 = vmatprep.subr.mxu0 0.0
    %1133 = vmatpush1.msra.mxu0 %v1047
    %1134 = vmatprep.subr.mxu0 0.0
    %1135 = vmatpush1.msra.mxu0 %v1048
    %1136 = vmatprep.subr.mxu0 0.0
    %1137 = vmatpush1.msra.mxu0 %v1049
    %1138 = vmatprep.subr.mxu0 0.0
    %1139 = vmatpush1.msra.mxu0 %v1050
    %1140 = vmatprep.subr.mxu0 0.0
    %1141 = vmatpush1.msra.mxu0 %v1051
    %1142 = vmatprep.subr.mxu0 0.0
    %1143 = vmatpush1.msra.mxu0 %v1052
    %1144 = vmatprep.subr.mxu0 0.0
    %1145 = vmatpush1.msra.mxu0 %v1053
    %1146 = vmatprep.subr.mxu0 0.0
    %1147 = vmatpush1.msra.mxu0 %v1054
    %1148 = vmatprep.subr.mxu0 0.0
    %1149 = vmatpush1.msra.mxu0 %v1055
    %1150 = vmatprep.subr.mxu0 0.0
    %1151 = vmatpush1.msra.mxu0 %v1056
    %1152 = vmatprep.subr.mxu0 0.0
    %1153 = vmatpush1.msra.mxu0 %v1057
    %1154 = vmatprep.mubr.f32.mxu0 %v1021
    %1155 = vmatmul.mubr.f32.gmra.mrb[0].mxu0 %v1019
    %v1156 = vpop.f32.mrb[0].mxu0
    %v1157 = vadd.f32 0.0, %v1156
    %v1158 = vpop.f32.mrb[0].mxu0
    %1159 = vdwg.mxu0
    %1160 = vmatprep.subr.mxu0 0.0
    %1161 = vmatpush1.msra.mxu0 %v1058
    %1162 = vmatprep.subr.mxu0 0.0
    %1163 = vmatpush1.msra.mxu0 %v1059
    %1164 = vmatprep.subr.mxu0 0.0
    %1165 = vmatpush1.msra.mxu0 %v1060
    %1166 = vmatprep.subr.mxu0 0.0
    %1167 = vmatpush1.msra.mxu0 %v1061
    %1168 = vmatprep.subr.mxu0 0.0
    %1169 = vmatpush1.msra.mxu0 %v1062
    %1170 = vmatprep.subr.mxu0 0.0
    %1171 = vmatpush1.msra.mxu0 %v1063
    %1172 = vmatprep.subr.mxu0 0.0
    %1173 = vmatpush1.msra.mxu0 %v1064
    %1174 = vmatprep.subr.mxu0 0.0
    %1175 = vmatpush1.msra.mxu0 %v1065
    %1176 = vmatprep.subr.mxu0 0.0
    %1177 = vmatpush1.msra.mxu0 %v1066
    %1178 = vmatprep.subr.mxu0 0.0
    %1179 = vmatpush1.msra.mxu0 %v1067
    %1180 = vmatprep.subr.mxu0 0.0
    %1181 = vmatpush1.msra.mxu0 %v1068
    %1182 = vmatprep.subr.mxu0 0.0
    %1183 = vmatpush1.msra.mxu0 %v1069
    %1184 = vmatprep.subr.mxu0 0.0
    %1185 = vmatpush1.msra.mxu0 %v1070
    %1186 = vmatprep.subr.mxu0 0.0
    %1187 = vmatpush1.msra.mxu0 %v1071
    %1188 = vmatprep.subr.mxu0 0.0
    %1189 = vmatpush1.msra.mxu0 %v1072
    %1190 = vmatprep.subr.mxu0 0.0
    %1191 = vmatpush1.msra.mxu0 %v1073
    %1192 = vmatprep.subr.mxu0 0.0
    %1193 = vmatpush1.msra.mxu0 %v1074
    %1194 = vmatprep.subr.mxu0 0.0
    %1195 = vmatpush1.msra.mxu0 %v1075
    %1196 = vmatprep.subr.mxu0 0.0
    %1197 = vmatpush1.msra.mxu0 %v1076
    %1198 = vmatprep.subr.mxu0 0.0
    %1199 = vmatpush1.msra.mxu0 %v1077
    %1200 = vmatprep.subr.mxu0 0.0
    %1201 = vmatpush1.msra.mxu0 %v1078
    %1202 = vmatprep.subr.mxu0 0.0
    %1203 = vmatpush1.msra.mxu0 %v1079
    %1204 = vmatprep.subr.mxu0 0.0
    %1205 = vmatpush1.msra.mxu0 %v1080
    %1206 = vmatprep.subr.mxu0 0.0
    %1207 = vmatpush1.msra.mxu0 %v1081
    %1208 = vmatprep.subr.mxu0 0.0
    %1209 = vmatpush1.msra.mxu0 %v1082
    %1210 = vmatprep.subr.mxu0 0.0
    %1211 = vmatpush1.msra.mxu0 %v1083
    %1212 = vmatprep.subr.mxu0 0.0
    %1213 = vmatpush1.msra.mxu0 %v1084
    %1214 = vmatprep.subr.mxu0 0.0
    %1215 = vmatpush1.msra.mxu0 %v1085
    %1216 = vmatprep.subr.mxu0 0.0
    %1217 = vmatpush1.msra.mxu0 %v1086
    %1218 = vmatprep.subr.mxu0 0.0
    %1219 = vmatpush1.msra.mxu0 %v1087
    %1220 = vmatprep.subr.mxu0 0.0
    %1221 = vmatpush1.msra.mxu0 %v1088
    %1222 = vmatprep.subr.mxu0 0.0
    %1223 = vmatpush1.msra.mxu0 %v1089
    %1224 = vmatprep.mubr.f32.mxu0 %v1025
    %1225 = vmatmul.mubr.f32.gmra.mrb[0].mxu0 %v1023
    %v1226 = vpop.f32.mrb[0].mxu0
    %v1227 = vadd.f32 %v1157, %v1226
    %v1228 = vpop.f32.mrb[0].mxu0
    %1229 = vdwg.mxu0
    %v1230 = vmul.f32 %v840, %v1227
    %vm1231 = vcmask 253952
    %v1232 = vsel %vm1231, %v1230, 0.0
    %1233 = vadd.xlane.f32.xlu0 %v1232
    %v1234 = vpop.xlane.xlu0 %1233
    %v1235 = vrot.slane %v1234, 4
    %v1236 = vadd.f32 %v1234, %v1235
    %v1237 = vrot.slane %v1236, 2
    %v1238 = vadd.f32 %v1236, %v1237
    %v1239 = vrot.slane %v1238, 1
    %v1240 = vadd.f32 %v1238, %v1239
    %s1241 = vtos %v1240
    %s1242 = smul.f32 %s1241, 0.03125
    %s1243 = scalar_lea.smem [#allocation4], 0
    %1244 = sst [smem:[%s1243]] %s1242
    // Predicated region
    $region38: #{given_mat_weighted_average_predictor.1} parent=1 // pred_check
      _
    $region39: #{given_mat_weighted_average_predictor.1} parent=1 // pred_check_branch
      %1246 = sbr.rel (0) target = $region41
    $region40: #{given_mat_weighted_average_predictor.1} parent=1 // pred_region
      %s1248 = ssub.s32 16, 16
      %1249 = vsyncadd [#allocation5], %s1248
      %1252 = dma.smem_to_hbm [#allocation4], 16, %s9, [#allocation5]
    $region41: #{given_mat_weighted_average_predictor.1} parent=1 // pred_fallthru
      _
    // Predicated region
    $region42: #{given_mat_weighted_average_predictor.1} parent=1 // pred_check
      _
    $region43: #{given_mat_weighted_average_predictor.1} parent=1 // pred_check_branch
      %1254 = sbr.rel (0) target = $region45
    $region44: #{given_mat_weighted_average_predictor.1} parent=1 // pred_region
      %1255 = dma.done [#allocation5], 16
    $region45: #{given_mat_weighted_average_predictor.1} parent=1 // pred_fallthru
      _
    %1256 = sfence
    %1257 = vsyncpa [#allocation5], 1

</llo_original>
